<compile_context>
chip_gen: v7x
topology: tpu7x:2x2x1
jax: 0.10.0
libtpu: 0.0.40
codegen_flags: <defaults>
</compile_context>

<pallas_src>
import functools

import jax
import jax.numpy as jnp
from jax.experimental import pallas as pl
from jax.experimental.pallas import tpu as pltpu


def _round_up(x, m):
    return (x + m - 1) // m * m


# ----------------------------------------------------------------------------
# Fused half-round kernel (one pallas_call per message-passing direction):
#   p   = A_rows @ h_bf16            (bf16 x bf16 -> f32 accumulation on the MXU)
#   gi  = gi_x_rows + p @ Wcomb      (AggConv linear + W_ih(msg) pre-fused)
#   gh  = h_rows @ W_hh              (gate-fused)
#   GRU gates, then LayerNorm masked to the H real lanes.
# Emits the f32 state (next GRU) and its bf16 copy (next aggregation).
# ----------------------------------------------------------------------------
def _half_round_kernel(H, a_ref, hbf_ref, h_ref, gix_ref, wcomb_ref, whh_ref,
                       bhn_ref, gamma_ref, beta_ref, out_ref, outbf_ref):
    Hp = out_ref.shape[1]

    # Aggregation: adjacency row tile (bf16) @ full bf16 node state.
    p = jnp.dot(a_ref[...], hbf_ref[...], preferred_element_type=jnp.float32)

    # Fused GRU gate matmuls: one (tile, Hp) @ (Hp, 3*Hp) per operand.
    gi = gix_ref[...] + jnp.dot(p, wcomb_ref[...],
                                preferred_element_type=jnp.float32)
    h = h_ref[...]
    gh = jnp.dot(h, whh_ref[...], preferred_element_type=jnp.float32)

    r = jax.nn.sigmoid(gi[:, 0:Hp] + gh[:, 0:Hp])
    z = jax.nn.sigmoid(gi[:, Hp:2 * Hp] + gh[:, Hp:2 * Hp])
    n = jnp.tanh(gi[:, 2 * Hp:] + r * (gh[:, 2 * Hp:] + bhn_ref[...]))
    h_new = (1.0 - z) * n + z * h

    # LayerNorm over the H real lanes (gamma/beta are zero-padded, so padded
    # output lanes remain exactly zero).
    lane = jax.lax.broadcasted_iota(jnp.int32, (1, Hp), 1)
    mask = lane < H
    mean = jnp.sum(h_new, axis=-1, keepdims=True) * (1.0 / H)
    d = jnp.where(mask, h_new - mean, 0.0)
    var = jnp.sum(d * d, axis=-1, keepdims=True) * (1.0 / H)
    y = d * jax.lax.rsqrt(var + 1e-5) * gamma_ref[...] + beta_ref[...]

    out_ref[...] = y
    outbf_ref[...] = y.astype(outbf_ref.dtype)


# ----------------------------------------------------------------------------
# pallas_call wrapper
# ----------------------------------------------------------------------------
def _compiler_params(tile_n, np_, hp):
    hp3 = 3 * hp
    per_call = (
        2 * tile_n * np_ * 2          # adjacency row tile (bf16, double buffered)
        + 2 * np_ * hp * 2            # resident bf16 node state
        + 2 * tile_n * hp * 4         # h row tile (f32)
        + 2 * tile_n * hp3 * 4        # fused gi_x row tile (f32)
        + 2 * 2 * hp * hp3 * 4        # Wcomb + W_hh (gate fused, f32)
        + 2 * tile_n * hp * (4 + 2)   # f32 + bf16 output tiles
        + 16 * hp * 4                 # biases / LayerNorm params
    )
    vmem = int(min(max(per_call + (8 << 20), 32 << 20), 48 << 20))
    return pltpu.CompilerParams(dimension_semantics=("parallel",),
                                vmem_limit_bytes=vmem)


def _half_round(H, a, hbf, h, gix, wcomb, whh, bhn, gamma, beta, tile_n, cparams):
    np_, hp = h.shape
    hp3 = 3 * hp
    return pl.pallas_call(
        functools.partial(_half_round_kernel, H),
        out_shape=(jax.ShapeDtypeStruct((np_, hp), jnp.float32),
                   jax.ShapeDtypeStruct((np_, hp), jnp.bfloat16)),
        grid_spec=pltpu.PrefetchScalarGridSpec(
            num_scalar_prefetch=0,
            grid=(np_ // tile_n,),
            in_specs=[
                pl.BlockSpec((tile_n, np_), lambda i: (i, 0)),   # A row tile (bf16), streamed
                pl.BlockSpec((np_, hp), lambda i: (0, 0)),       # h (bf16), resident
                pl.BlockSpec((tile_n, hp), lambda i: (i, 0)),    # h rows (f32)
                pl.BlockSpec((tile_n, hp3), lambda i: (i, 0)),   # precomputed gi_x rows
                pl.BlockSpec((hp, hp3), lambda i: (0, 0)),       # Wcomb = W_agg^T @ W_ih_msg^T
                pl.BlockSpec((hp, hp3), lambda i: (0, 0)),       # W_hh, gate fused
                pl.BlockSpec((1, hp), lambda i: (0, 0)),         # b_hh (n gate only)
                pl.BlockSpec((1, hp), lambda i: (0, 0)),         # LN gamma
                pl.BlockSpec((1, hp), lambda i: (0, 0)),         # LN beta
            ],
            out_specs=(pl.BlockSpec((tile_n, hp), lambda i: (i, 0)),
                       pl.BlockSpec((tile_n, hp), lambda i: (i, 0))),
        ),
        compiler_params=cparams,
    )(a, hbf, h, gix, wcomb, whh, bhn, gamma, beta)


# ----------------------------------------------------------------------------
# Parameter packing (lane-padded, gate-fused, pre-transposed, agg-fused)
# ----------------------------------------------------------------------------
def _pack_gru(w_ih, w_hh, b_ih, b_hh, H, F, Hp):
    """PyTorch nn.GRU weights (gate order r,z,n along dim 0) ->
       lane-padded, gate-fused, pre-transposed operands."""
    hp3 = 3 * Hp
    wmsg = jnp.zeros((Hp, hp3), jnp.float32)   # msg part of W_ih
    wx = jnp.zeros((F, hp3), jnp.float32)      # x   part of W_ih (wrapper-only)
    whh = jnp.zeros((Hp, hp3), jnp.float32)
    bgi = jnp.zeros((1, hp3), jnp.float32)     # b_ih (+ b_hh for r,z) folded into gi_x
    for g in range(3):
        wi = w_ih[g * H:(g + 1) * H, :]        # (H, H+F)
        wh = w_hh[g * H:(g + 1) * H, :]        # (H, H)
        wmsg = wmsg.at[:H, g * Hp:g * Hp + H].set(wi[:, :H].T)
        wx = wx.at[:, g * Hp:g * Hp + H].set(wi[:, H:].T)
        whh = whh.at[:H, g * Hp:g * Hp + H].set(wh.T)
        b = b_ih[g * H:(g + 1) * H]
        if g < 2:                              # r, z gates: hidden bias folded too
            b = b + b_hh[g * H:(g + 1) * H]
        bgi = bgi.at[0, g * Hp:g * Hp + H].set(b)
    bhn = jnp.zeros((1, Hp), jnp.float32).at[0, :H].set(b_hh[2 * H:3 * H])
    return wmsg, wx, whh, bgi, bhn


def _fuse_direction(w_agg, b_agg, w_ih, w_hh, b_ih, b_hh, x_p, deg, H, F, Hp):
    """Pre-fuse the AggConv linear (+bias) and the round-invariant x projection
    into the GRU input operands for one direction (all at HIGHEST precision)."""
    hi = jax.lax.Precision.HIGHEST
    wmsg, wx, whh, bgi, bhn = _pack_gru(w_ih, w_hh, b_ih, b_hh, H, F, Hp)
    waggT = jnp.zeros((Hp, Hp), jnp.float32).at[:H, :H].set(w_agg.T)
    bagg = jnp.zeros((1, Hp), jnp.float32).at[0, :H].set(b_agg)
    wcomb = jnp.dot(waggT, wmsg, precision=hi)                  # (Hp, 3Hp)
    bmsg = jnp.dot(bagg, wmsg, precision=hi)                    # (1, 3Hp)
    gix = jnp.dot(x_p, wx, precision=hi) + bgi + deg * bmsg     # (Np, 3Hp)
    return gix, wcomb, whh, bhn


# ----------------------------------------------------------------------------
# Forward wrapper
# ----------------------------------------------------------------------------
def multi_gcn_encoder(x, adj, adj_r, params, num_rounds, tile_n=256):
    N, F = x.shape
    H = params["w_agg"].shape[0]
    Hp = _round_up(max(H, 128), 128)                 # lane-dense hidden width
    Np = _round_up(N, 128)                           # lane-dense adjacency minor dim
    tile_n = max(16, min(_round_up(tile_n, 16), Np))
    Np = _round_up(Np, tile_n)

    # Padded inputs.  Adjacency entries are small integer edge counts -> bf16-exact.
    x_p = jnp.zeros((Np, F), jnp.float32).at[:N].set(x.astype(jnp.float32))
    a_f32 = jnp.zeros((Np, Np), jnp.float32).at[:N, :N].set(adj)
    a_r32 = jnp.zeros((Np, Np), jnp.float32).at[:N, :N].set(adj_r)
    deg_f = jnp.sum(a_f32, axis=1, keepdims=True)    # in-degree per target (Np, 1)
    deg_r = jnp.sum(a_r32, axis=1, keepdims=True)
    a_f = a_f32.astype(jnp.bfloat16)
    a_r = a_r32.astype(jnp.bfloat16)

    gix_f, wcomb_f, whh_f, bhn_f = _fuse_direction(
        params["w_agg"], params["b_agg"], params["w_ih"], params["w_hh"],
        params["b_ih"], params["b_hh"], x_p, deg_f, H, F, Hp)
    gix_r, wcomb_r, whh_r, bhn_r = _fuse_direction(
        params["w_agg_r"], params["b_agg_r"], params["w_ih_r"], params["w_hh_r"],
        params["b_ih_r"], params["b_hh_r"], x_p, deg_r, H, F, Hp)
    gamma = jnp.zeros((1, Hp), jnp.float32).at[0, :H].set(params["ln_gamma"])
    beta = jnp.zeros((1, Hp), jnp.float32).at[0, :H].set(params["ln_beta"])

    # node_state = torch.ones(1, N, H); padded node rows / hidden lanes are zero.
    h = jnp.zeros((Np, Hp), jnp.float32).at[:N, :H].set(1.0)
    hbf = h.astype(jnp.bfloat16)

    cparams = _compiler_params(tile_n, Np, Hp)
    for _ in range(num_rounds):
        h, hbf = _half_round(H, a_f, hbf, h, gix_f, wcomb_f, whh_f, bhn_f,
                             gamma, beta, tile_n, cparams)          # forward dir
        h, hbf = _half_round(H, a_r, hbf, h, gix_r, wcomb_r, whh_r, bhn_r,
                             gamma, beta, tile_n, cparams)          # reverse dir
    return h[:N, :H]


# ----------------------------------------------------------------------------
# Pure-JAX reference (PyTorch semantics, HIGHEST-precision matmuls; mirrors only
# the kernel's intentional bf16 rounding of the node state that feeds the
# aggregation matmul so tolerances can stay tight)
# ----------------------------------------------------------------------------
def reference(x, adj, adj_r, params, num_rounds):
    H = params["w_agg"].shape[0]
    N = x.shape[0]
    gamma, beta = params["ln_gamma"], params["ln_beta"]
    hi = jax.lax.Precision.HIGHEST

    def ln(v):
        mean = jnp.mean(v, axis=-1, keepdims=True)
        var = jnp.mean(jnp.square(v - mean), axis=-1, keepdims=True)
        return (v - mean) / jnp.sqrt(var + 1e-5) * gamma + beta

    def aggregate(h, a, w, b):
        hb = h.astype(jnp.bfloat16).astype(jnp.float32)
        lin = jnp.dot(hb, w.T, precision=hi) + b
        return jnp.dot(a, lin, precision=hi)

    def gru(h, msg, wih, whh, bih, bhh):
        xc = jnp.concatenate([msg, x], axis=-1)
        gi = jnp.dot(xc, wih.T, precision=hi) + bih
        gh = jnp.dot(h, whh.T, precision=hi) + bhh
        r = jax.nn.sigmoid(gi[:, :H] + gh[:, :H])
        z = jax.nn.sigmoid(gi[:, H:2 * H] + gh[:, H:2 * H])
        n = jnp.tanh(gi[:, 2 * H:] + r * gh[:, 2 * H:])
        return (1.0 - z) * n + z * h

    h = jnp.ones((N, H), jnp.float32)
    for _ in range(num_rounds):
        msg = aggregate(h, adj, params["w_agg"], params["b_agg"])
        h = ln(gru(h, msg, params["w_ih"], params["w_hh"],
                   params["b_ih"], params["b_hh"]))
        msg = aggregate(h, adj_r, params["w_agg_r"], params["b_agg_r"])
        h = ln(gru(h, msg, params["w_ih_r"], params["w_hh_r"],
                   params["b_ih_r"], params["b_hh_r"]))
    return h


# ----------------------------------------------------------------------------
# Deterministic parameter init (shapes from MultiGCNEncoder.__init__)
# ----------------------------------------------------------------------------
def init_params(key, H, F):
    ks = jax.random.split(key, 12)
    s = 0.1
    return {
        "w_agg":   jax.random.normal(ks[0], (H, H)) * s,
        "b_agg":   jax.random.normal(ks[1], (H,)) * s,
        "w_agg_r": jax.random.normal(ks[2], (H, H)) * s,
        "b_agg_r": jax.random.normal(ks[3], (H,)) * s,
        "w_ih":    jax.random.normal(ks[4], (3 * H, H + F)) * s,
        "w_hh":    jax.random.normal(ks[5], (3 * H, H)) * s,
        "b_ih":    jax.random.normal(ks[6], (3 * H,)) * s,
        "b_hh":    jax.random.normal(ks[7], (3 * H,)) * s,
        "w_ih_r":  jax.random.normal(ks[8], (3 * H, H + F)) * s,
        "w_hh_r":  jax.random.normal(ks[9], (3 * H, H)) * s,
        "b_ih_r":  jax.random.normal(ks[10], (3 * H,)) * s,
        "b_hh_r":  jax.random.normal(ks[11], (3 * H,)) * s,
        "ln_gamma": jnp.ones((H,), jnp.float32),
        "ln_beta":  jnp.zeros((H,), jnp.float32),
    }


if __name__ == "__main__":
    key = jax.random.PRNGKey(0)
    N, H, F, E = 90, 32, 8, 256        # num_nodes, dim_hidden, dim_feature, num_edges
    num_rounds = 2

    kx, ks, kt, kp = jax.random.split(key, 4)
    x = jax.random.normal(kx, (N, F), jnp.float32)
    src = jax.random.randint(ks, (E,), 0, N)
    tgt = jax.random.randint(kt, (E,), 0, N)
    # edge_index = [src; tgt]; dense adjacency A[t, s] = #edges s -> t
    adj = jnp.zeros((N, N), jnp.float32).at[tgt, src].add(1.0)
    # r_edge_index = [tgt; src]  =>  reversed adjacency
    adj_r = jnp.zeros((N, N), jnp.float32).at[src, tgt].add(1.0)

    params = init_params(kp, H, F)

    # tile_n=64 -> 2 row tiles (exercises the grid / streaming path).
    out = multi_gcn_encoder(x, adj, adj_r, params, num_rounds, tile_n=64)
    out = jax.block_until_ready(out)

    ref = reference(x, adj, adj_r, params, num_rounds)
    assert out.shape == (N, H)
    assert bool(jnp.all(jnp.isfinite(out)))
    # Tolerance accounts for the (intentional, mirrored) bf16 node-state rounding
    # feeding the aggregation matmul and the fused-weight reassociation.
    assert bool(jnp.allclose(out, ref, atol=5e-3, rtol=5e-3)), "mismatch vs JAX reference"
    print("KERNEL_OK")
</pallas_src>

<mosaic_0001>
module attributes {stable_mosaic.version = 11 : i64} {
  func.func @_half_round_kernel(%arg0: i32, %arg1: memref<64x128xbf16, #tpu.memory_space<vmem>>, %arg2: memref<128x128xbf16, #tpu.memory_space<vmem>>, %arg3: memref<64x128xf32, #tpu.memory_space<vmem>>, %arg4: memref<64x384xf32, #tpu.memory_space<vmem>>, %arg5: memref<128x384xf32, #tpu.memory_space<vmem>>, %arg6: memref<128x384xf32, #tpu.memory_space<vmem>>, %arg7: memref<1x128xf32, #tpu.memory_space<vmem>>, %arg8: memref<1x128xf32, #tpu.memory_space<vmem>>, %arg9: memref<1x128xf32, #tpu.memory_space<vmem>>, %arg10: memref<64x128xf32, #tpu.memory_space<vmem>>, %arg11: memref<64x128xbf16, #tpu.memory_space<vmem>>) attributes {dimension_semantics = [#tpu.dimension_semantics<parallel>], iteration_bounds = array<i64: 2>, scalar_prefetch = 0 : i64, scratch_operands = 0 : i64, tpu.core_type = #tpu.core_type<tc>, window_params = [{transform_indices = @transform_0, window_bounds = array<i64: 64, 128>}, {pipeline_mode = #tpu.pipeline_mode<synchronous>, transform_indices = @transform_1, window_bounds = array<i64: 128, 128>}, {transform_indices = @transform_2, window_bounds = array<i64: 64, 128>}, {transform_indices = @transform_3, window_bounds = array<i64: 64, 384>}, {pipeline_mode = #tpu.pipeline_mode<synchronous>, transform_indices = @transform_4, window_bounds = array<i64: 128, 384>}, {pipeline_mode = #tpu.pipeline_mode<synchronous>, transform_indices = @transform_5, window_bounds = array<i64: 128, 384>}, {pipeline_mode = #tpu.pipeline_mode<synchronous>, transform_indices = @transform_6, window_bounds = array<i64: 1, 128>}, {pipeline_mode = #tpu.pipeline_mode<synchronous>, transform_indices = @transform_7, window_bounds = array<i64: 1, 128>}, {pipeline_mode = #tpu.pipeline_mode<synchronous>, transform_indices = @transform_8, window_bounds = array<i64: 1, 128>}, {transform_indices = @transform_9, window_bounds = array<i64: 64, 128>}, {transform_indices = @transform_10, window_bounds = array<i64: 64, 128>}]} {
    %c0 = arith.constant 0 : index
    %c0_0 = arith.constant 0 : index
    %0 = vector.load %arg1[%c0, %c0_0] : memref<64x128xbf16, #tpu.memory_space<vmem>>, vector<64x128xbf16>
    %c0_1 = arith.constant 0 : index
    %c0_2 = arith.constant 0 : index
    %1 = vector.load %arg2[%c0_1, %c0_2] : memref<128x128xbf16, #tpu.memory_space<vmem>>, vector<128x128xbf16>
    %cst = arith.constant dense<0.000000e+00> : vector<64x128xf32>
    %2 = tpu.matmul %0, %1, %cst {dimension_numbers = #tpu.dot_dimension_numbers<[1], [0], [0], [1], [0, 0, 1, 1], [], []>} : vector<64x128xbf16>, vector<128x128xbf16>, vector<64x128xf32> -> vector<64x128xf32>
    %c0_3 = arith.constant 0 : index
    %c0_4 = arith.constant 0 : index
    %3 = vector.load %arg4[%c0_3, %c0_4] : memref<64x384xf32, #tpu.memory_space<vmem>>, vector<64x384xf32>
    %c0_5 = arith.constant 0 : index
    %c0_6 = arith.constant 0 : index
    %4 = vector.load %arg5[%c0_5, %c0_6] : memref<128x384xf32, #tpu.memory_space<vmem>>, vector<128x384xf32>
    %cst_7 = arith.constant dense<0.000000e+00> : vector<64x384xf32>
    %5 = tpu.matmul %2, %4, %cst_7 {dimension_numbers = #tpu.dot_dimension_numbers<[1], [0], [0], [1], [0, 0, 1, 1], [], []>} : vector<64x128xf32>, vector<128x384xf32>, vector<64x384xf32> -> vector<64x384xf32>
    %6 = arith.addf %3, %5 : vector<64x384xf32>
    %c0_8 = arith.constant 0 : index
    %c0_9 = arith.constant 0 : index
    %7 = vector.load %arg3[%c0_8, %c0_9] : memref<64x128xf32, #tpu.memory_space<vmem>>, vector<64x128xf32>
    %c0_10 = arith.constant 0 : index
    %c0_11 = arith.constant 0 : index
    %8 = vector.load %arg6[%c0_10, %c0_11] : memref<128x384xf32, #tpu.memory_space<vmem>>, vector<128x384xf32>
    %cst_12 = arith.constant dense<0.000000e+00> : vector<64x384xf32>
    %9 = tpu.matmul %7, %8, %cst_12 {dimension_numbers = #tpu.dot_dimension_numbers<[1], [0], [0], [1], [0, 0, 1, 1], [], []>} : vector<64x128xf32>, vector<128x384xf32>, vector<64x384xf32> -> vector<64x384xf32>
    %10 = vector.extract_strided_slice %6 {offsets = [0, 0], sizes = [64, 128], strides = [1, 1]} : vector<64x384xf32> to vector<64x128xf32>
    %11 = vector.extract_strided_slice %9 {offsets = [0, 0], sizes = [64, 128], strides = [1, 1]} : vector<64x384xf32> to vector<64x128xf32>
    %12 = arith.addf %10, %11 : vector<64x128xf32>
    %13 = arith.negf %12 : vector<64x128xf32>
    %14 = math.exp %13 : vector<64x128xf32>
    %cst_13 = arith.constant 1.000000e+00 : f32
    %15 = vector.broadcast %cst_13 : f32 to vector<64x128xf32>
    %16 = arith.addf %15, %14 : vector<64x128xf32>
    %17 = arith.divf %15, %16 : vector<64x128xf32>
    %18 = vector.extract_strided_slice %6 {offsets = [0, 128], sizes = [64, 128], strides = [1, 1]} : vector<64x384xf32> to vector<64x128xf32>
    %19 = vector.extract_strided_slice %9 {offsets = [0, 128], sizes = [64, 128], strides = [1, 1]} : vector<64x384xf32> to vector<64x128xf32>
    %20 = arith.addf %18, %19 : vector<64x128xf32>
    %21 = arith.negf %20 : vector<64x128xf32>
    %22 = math.exp %21 : vector<64x128xf32>
    %cst_14 = arith.constant 1.000000e+00 : f32
    %23 = vector.broadcast %cst_14 : f32 to vector<64x128xf32>
    %24 = arith.addf %23, %22 : vector<64x128xf32>
    %25 = arith.divf %23, %24 : vector<64x128xf32>
    %26 = vector.extract_strided_slice %6 {offsets = [0, 256], sizes = [64, 128], strides = [1, 1]} : vector<64x384xf32> to vector<64x128xf32>
    %27 = vector.extract_strided_slice %9 {offsets = [0, 256], sizes = [64, 128], strides = [1, 1]} : vector<64x384xf32> to vector<64x128xf32>
    %c0_15 = arith.constant 0 : index
    %c0_16 = arith.constant 0 : index
    %28 = vector.load %arg7[%c0_15, %c0_16] : memref<1x128xf32, #tpu.memory_space<vmem>>, vector<1x128xf32>
    %29 = vector.broadcast %28 : vector<1x128xf32> to vector<64x128xf32>
    %30 = arith.addf %27, %29 : vector<64x128xf32>
    %31 = arith.mulf %17, %30 : vector<64x128xf32>
    %32 = arith.addf %26, %31 : vector<64x128xf32>
    %33 = math.tanh %32 : vector<64x128xf32>
    %cst_17 = arith.constant 1.000000e+00 : f32
    %34 = vector.broadcast %cst_17 : f32 to vector<64x128xf32>
    %35 = arith.subf %34, %25 : vector<64x128xf32>
    %36 = arith.mulf %35, %33 : vector<64x128xf32>
    %37 = arith.mulf %25, %7 : vector<64x128xf32>
    %38 = arith.addf %36, %37 : vector<64x128xf32>
    %39 = tpu.iota {dimensions = array<i32: 1>} : vector<1x128xi32>
    %c32_i32 = arith.constant 32 : i32
    %40 = vector.broadcast %c32_i32 : i32 to vector<1x128xi32>
    %41 = arith.cmpi slt, %39, %40 : vector<1x128xi32>
    %cst_18 = arith.constant dense<0.000000e+00> : vector<64xf32>
    %42 = vector.multi_reduction <add>, %38, %cst_18 [1] : vector<64x128xf32> to vector<64xf32>
    %43 = vector.shape_cast %42 : vector<64xf32> to vector<64x1xf32>
    %cst_19 = arith.constant 3.125000e-02 : f32
    %44 = vector.broadcast %cst_19 : f32 to vector<64x1xf32>
    %45 = arith.mulf %43, %44 : vector<64x1xf32>
    %46 = vector.broadcast %45 : vector<64x1xf32> to vector<64x128xf32>
    %47 = arith.subf %38, %46 : vector<64x128xf32>
    %cst_20 = arith.constant 0.000000e+00 : f32
    %48 = vector.shape_cast %41 : vector<1x128xi1> to vector<1x128xi1>
    %49 = vector.broadcast %48 : vector<1x128xi1> to vector<64x128xi1>
    %50 = vector.broadcast %cst_20 : f32 to vector<64x128xf32>
    %51 = arith.select %49, %47, %50 : vector<64x128xi1>, vector<64x128xf32>
    %52 = arith.mulf %51, %51 : vector<64x128xf32>
    %cst_21 = arith.constant dense<0.000000e+00> : vector<64xf32>
    %53 = vector.multi_reduction <add>, %52, %cst_21 [1] : vector<64x128xf32> to vector<64xf32>
    %54 = vector.shape_cast %53 : vector<64xf32> to vector<64x1xf32>
    %cst_22 = arith.constant 3.125000e-02 : f32
    %55 = vector.broadcast %cst_22 : f32 to vector<64x1xf32>
    %56 = arith.mulf %54, %55 : vector<64x1xf32>
    %cst_23 = arith.constant 9.99999974E-6 : f32
    %57 = vector.broadcast %cst_23 : f32 to vector<64x1xf32>
    %58 = arith.addf %56, %57 : vector<64x1xf32>
    %59 = math.rsqrt %58 : vector<64x1xf32>
    %60 = vector.broadcast %59 : vector<64x1xf32> to vector<64x128xf32>
    %61 = arith.mulf %51, %60 : vector<64x128xf32>
    %c0_24 = arith.constant 0 : index
    %c0_25 = arith.constant 0 : index
    %62 = vector.load %arg8[%c0_24, %c0_25] : memref<1x128xf32, #tpu.memory_space<vmem>>, vector<1x128xf32>
    %63 = vector.broadcast %62 : vector<1x128xf32> to vector<64x128xf32>
    %64 = arith.mulf %61, %63 : vector<64x128xf32>
    %c0_26 = arith.constant 0 : index
    %c0_27 = arith.constant 0 : index
    %65 = vector.load %arg9[%c0_26, %c0_27] : memref<1x128xf32, #tpu.memory_space<vmem>>, vector<1x128xf32>
    %66 = vector.broadcast %65 : vector<1x128xf32> to vector<64x128xf32>
    %67 = arith.addf %64, %66 : vector<64x128xf32>
    %c0_28 = arith.constant 0 : index
    %c0_29 = arith.constant 0 : index
    %68 = vector.load %arg10[%c0_28, %c0_29] : memref<64x128xf32, #tpu.memory_space<vmem>>, vector<64x128xf32>
    tpu.vector_store %arg10[%c0_28, %c0_29], %67 {strides = array<i32>} : memref<64x128xf32, #tpu.memory_space<vmem>>, vector<64x128xf32>,
    %69 = arith.truncf %67 : vector<64x128xf32> to vector<64x128xbf16>
    %c0_30 = arith.constant 0 : index
    %c0_31 = arith.constant 0 : index
    %70 = vector.load %arg11[%c0_30, %c0_31] : memref<64x128xbf16, #tpu.memory_space<vmem>>, vector<64x128xbf16>
    tpu.vector_store %arg11[%c0_30, %c0_31], %69 {strides = array<i32>} : memref<64x128xbf16, #tpu.memory_space<vmem>>, vector<64x128xbf16>,
    return
  }
  func.func @transform_0(%arg0: i32) -> (i32, i32) {
    %c0_i32 = arith.constant 0 : i32
    %c0_i32_0 = arith.constant 0 : i32
    return %arg0, %c0_i32 : i32, i32
  }
  func.func @transform_1(%arg0: i32) -> (i32, i32) {
    %c0_i32 = arith.constant 0 : i32
    %c0_i32_0 = arith.constant 0 : i32
    %c0_i32_1 = arith.constant 0 : i32
    return %c0_i32, %c0_i32_0 : i32, i32
  }
  func.func @transform_2(%arg0: i32) -> (i32, i32) {
    %c0_i32 = arith.constant 0 : i32
    %c0_i32_0 = arith.constant 0 : i32
    return %arg0, %c0_i32 : i32, i32
  }
  func.func @transform_3(%arg0: i32) -> (i32, i32) {
    %c0_i32 = arith.constant 0 : i32
    %c0_i32_0 = arith.constant 0 : i32
    return %arg0, %c0_i32 : i32, i32
  }
  func.func @transform_4(%arg0: i32) -> (i32, i32) {
    %c0_i32 = arith.constant 0 : i32
    %c0_i32_0 = arith.constant 0 : i32
    %c0_i32_1 = arith.constant 0 : i32
    return %c0_i32, %c0_i32_0 : i32, i32
  }
  func.func @transform_5(%arg0: i32) -> (i32, i32) {
    %c0_i32 = arith.constant 0 : i32
    %c0_i32_0 = arith.constant 0 : i32
    %c0_i32_1 = arith.constant 0 : i32
    return %c0_i32, %c0_i32_0 : i32, i32
  }
  func.func @transform_6(%arg0: i32) -> (i32, i32) {
    %c0_i32 = arith.constant 0 : i32
    %c0_i32_0 = arith.constant 0 : i32
    %c0_i32_1 = arith.constant 0 : i32
    return %c0_i32, %c0_i32_0 : i32, i32
  }
  func.func @transform_7(%arg0: i32) -> (i32, i32) {
    %c0_i32 = arith.constant 0 : i32
    %c0_i32_0 = arith.constant 0 : i32
    %c0_i32_1 = arith.constant 0 : i32
    return %c0_i32, %c0_i32_0 : i32, i32
  }
  func.func @transform_8(%arg0: i32) -> (i32, i32) {
    %c0_i32 = arith.constant 0 : i32
    %c0_i32_0 = arith.constant 0 : i32
    %c0_i32_1 = arith.constant 0 : i32
    return %c0_i32, %c0_i32_0 : i32, i32
  }
  func.func @transform_9(%arg0: i32) -> (i32, i32) {
    %c0_i32 = arith.constant 0 : i32
    %c0_i32_0 = arith.constant 0 : i32
    return %arg0, %c0_i32 : i32, i32
  }
  func.func @transform_10(%arg0: i32) -> (i32, i32) {
    %c0_i32 = arith.constant 0 : i32
    %c0_i32_0 = arith.constant 0 : i32
    return %arg0, %c0_i32 : i32, i32
  }
}

</mosaic_0001>

<llo_original>
// kernel: tpu_custom_call.1
$region0: #{tpu_custom_call.1}
  #allocation0 [shape = 'u32[]', space=smem, size = 0x4, offset = 0x4, fixed_abs, tag = 'smem constant byte address 0x4 - core index']
  #allocation1 [shape = 'u32[144,128]{1,0:T(1,128)}', space=vmem, size = 0x12000, scoped, tag = 'internal scratch']
  %s0 = inlined_call_operand.hbm [shape: bf16[128,128], index: 0, kind: input, shape index: {}]
  %s1 = inlined_call_operand.hbm [shape: bf16[128,128], index: 1, kind: input, shape index: {}]
  %s2 = inlined_call_operand.hbm [shape: f32[128,128], index: 2, kind: input, shape index: {}]
  %s3 = inlined_call_operand.hbm [shape: f32[128,384], index: 3, kind: input, shape index: {}]
  %s4 = inlined_call_operand.hbm [shape: f32[128,384], index: 4, kind: input, shape index: {}]
  %s5 = inlined_call_operand.hbm [shape: f32[128,384], index: 5, kind: input, shape index: {}]
  %s6 = inlined_call_operand.vmem [shape: f32[1,128], index: 6, kind: input, shape index: {}]
  %s7 = inlined_call_operand.vmem [shape: f32[1,128], index: 7, kind: input, shape index: {}]
  %s8 = inlined_call_operand.vmem [shape: f32[1,128], index: 8, kind: input, shape index: {}]
  %s9 = inlined_call_operand.hbm [shape: f32[128,128], index: 9, kind: output, shape index: {0}]
  %s10 = inlined_call_operand.hbm [shape: bf16[128,128], index: 10, kind: output, shape index: {1}]
  %11 = xla_tuple %s9, %s10
  %s12 = sld [smem:[#allocation0]]
  $region101: #{tpu_custom_call.1} parent=0
    _
  %s14 = ssub.s32 1, %s12
  %s15 = scalar_select 0, %s14, %s12
  $region1: #{tpu_custom_call.1} parent=0
    #allocation2 [shape = 'u8[32768]{0}', space=vmem, size = 0x8000, scoped, tag = 'input window, operand 0']
    #allocation3 [shape = 's32[2]{0}', space=sflag, size = 0x8, scoped, tag = 'scoped memory for tpu_custom_call.1']
    #allocation4 [shape = 's32[2]{0}', space=sflag, size = 0x8, scoped, tag = 'scoped memory for tpu_custom_call.1']
    #allocation5 [shape = 'u8[32768]{0}', space=vmem, size = 0x8000, scoped, tag = 'input window, operand 1, single buffered']
    #allocation6 [shape = 's32[1]{0}', space=sflag, size = 0x4, scoped, tag = 'scoped memory for tpu_custom_call.1']
    #allocation7 [shape = 'u8[65536]{0}', space=vmem, size = 0x10000, scoped, tag = 'input window, operand 2']
    #allocation8 [shape = 'u8[196608]{0}', space=vmem, size = 0x30000, scoped, tag = 'input window, operand 3']
    #allocation9 [shape = 'u8[196608]{0}', space=vmem, size = 0x30000, scoped, tag = 'input window, operand 4, single buffered']
    #allocation10 [shape = 'u8[196608]{0}', space=vmem, size = 0x30000, scoped, tag = 'input window, operand 5, single buffered']
    #allocation11 [shape = 's32[1]{0}', space=sflag, size = 0x4, scoped, tag = 'scoped memory for tpu_custom_call.1']
    #allocation12 [shape = 'u8[65536]{0}', space=vmem, size = 0x10000, scoped, tag = 'output window, operand 0']
    #allocation13 [shape = 'u8[32768]{0}', space=vmem, size = 0x8000, scoped, tag = 'output window, operand 1']
    #allocation14 [shape = 's32[2]{0}', space=sflag, size = 0x8, scoped, tag = 'scoped memory for tpu_custom_call.1']
    %16 = vsyncpa [#allocation3], 0
    %s17 = scalar_lea.sflag [#allocation3], 1
    %18 = vsyncpa %s17, 0
    %19 = vsyncpa [#allocation6], 0
    %20 = vsyncpa [#allocation11], 0
    %21 = vsyncpa [#allocation4], 0
    %s22 = scalar_lea.sflag [#allocation4], 1
    %23 = vsyncpa %s22, 0
    %24 = vsyncpa [#allocation14], 0
    %s25 = scalar_lea.sflag [#allocation14], 1
    %26 = vsyncpa %s25, 0
    loop: start=0, step=1, limit=4
    $region2: #{tpu_custom_call.1} parent=1 // loop_pre_header
      _
    $region3: #{tpu_custom_call.1} parent=1 // loop_header
      %s28 = sphi 0, %s32
      %p29 = scmp.ge.s32.totalorder %s28, 4
      %s38 = sphi 0, %s40
      %s41 = sphi 0, %s38
      %s42 = sphi 0, %s41
      %s58 = sphi 0, %s42
      %s62 = sphi 0, %s62
      %s64 = sphi 0, %s62
      %s65 = sphi 0, %s64
      %s79 = sphi 0, %s65
      %s85 = sphi 0, %s87
      %s88 = sphi 0, %s85
      %s89 = sphi 0, %s88
      %s105 = sphi 0, %s89
      %s111 = sphi 0, %s113
      %s114 = sphi 0, %s111
      %s115 = sphi 0, %s114
      %s131 = sphi 0, %s115
      %s135 = sphi 0, %s135
      %s137 = sphi 0, %s135
      %s138 = sphi 0, %s137
      %s152 = sphi 0, %s138
      %s156 = sphi 0, %s156
      %s158 = sphi 0, %s156
      %s159 = sphi 0, %s158
      %s173 = sphi 0, %s159
      %s177 = sphi 0, %s177
      %s179 = sphi 0, %s177
      %s180 = sphi 0, %s179
      %s194 = sphi 0, %s180
      %s198 = sphi 0, %s198
      %s200 = sphi 0, %s198
      %s201 = sphi 0, %s200
      %s215 = sphi 0, %s201
      %s219 = sphi 0, %s219
      %s221 = sphi 0, %s219
      %s222 = sphi 0, %s221
      %s236 = sphi 0, %s222
      %s242 = sphi 0, %s244
      %s245 = sphi 0, %s242
      %s246 = sphi 0, %s245
      %s262 = sphi 0, %s246
      %s268 = sphi 0, %s270
      %s271 = sphi 0, %s268
      %s272 = sphi 0, %s271
      %s288 = sphi 0, %s272
    $region4: #{tpu_custom_call.1} parent=1 // loop_header_branch
      %31 = sbr.rel (%p29) target = $region8
    $region5: #{tpu_custom_call.1} parent=1 // loop_body
      %s33 = ssub.s32 %s28, 1
      %s34 = ssub.s32 %s28, 2
      %s35 = sadd.s32 %s28, 1
      %s36 = ssub.s32 %s28, %s35
      %p37 = scmp.eq.s32.totalorder %s36, 0
      %s39 = sadd.s32 %s38, 1
      %s40 = scalar_select %p37, %s38, %s39
      %p43 = pneg %p37
      %p44 = scmp.eq.s32.totalorder %s28, 1
      %p45 = por %p43, %p44
      %p46 = scmp.ne.s32.totalorder %s38, %s41
      %p47 = scmp.eq.s32.totalorder %s28, 0
      %p48 = por %p46, %p47
      %p49 = scmp.ne.s32.totalorder %s38, %s41
      %p50 = scmp.eq.s32.totalorder %s33, 1
      %p51 = por %p49, %p50
      %p52 = scmp.ne.s32.totalorder %s41, %s42
      %p53 = scmp.eq.s32.totalorder %s33, 0
      %p54 = por %p52, %p53
      %p55 = scmp.ne.s32.totalorder %s41, %s42
      %p56 = scmp.eq.s32.totalorder %s34, 1
      %p57 = por %p55, %p56
      %p59 = scmp.ne.s32.totalorder %s42, %s58
      %p60 = scmp.eq.s32.totalorder %s34, 0
      %p61 = por %p59, %p60
      %s63 = sadd.s32 %s62, 1
      %p66 = scmp.eq.s32.totalorder %s28, 1
      %p67 = scmp.ne.s32.totalorder %s62, %s64
      %p68 = scmp.eq.s32.totalorder %s28, 0
      %p69 = por %p67, %p68
      %p70 = scmp.ne.s32.totalorder %s62, %s64
      %p71 = scmp.eq.s32.totalorder %s33, 1
      %p72 = por %p70, %p71
      %p73 = scmp.ne.s32.totalorder %s64, %s65
      %p74 = scmp.eq.s32.totalorder %s33, 0
      %p75 = por %p73, %p74
      %p76 = scmp.ne.s32.totalorder %s64, %s65
      %p77 = scmp.eq.s32.totalorder %s34, 1
      %p78 = por %p76, %p77
      %p80 = scmp.ne.s32.totalorder %s65, %s79
      %p81 = scmp.eq.s32.totalorder %s34, 0
      %p82 = por %p80, %p81
      %s83 = ssub.s32 %s28, %s35
      %p84 = scmp.eq.s32.totalorder %s83, 0
      %s86 = sadd.s32 %s85, 1
      %s87 = scalar_select %p84, %s85, %s86
      %p90 = pneg %p84
      %p91 = scmp.eq.s32.totalorder %s28, 1
      %p92 = por %p90, %p91
      %p93 = scmp.ne.s32.totalorder %s85, %s88
      %p94 = scmp.eq.s32.totalorder %s28, 0
      %p95 = por %p93, %p94
      %p96 = scmp.ne.s32.totalorder %s85, %s88
      %p97 = scmp.eq.s32.totalorder %s33, 1
      %p98 = por %p96, %p97
      %p99 = scmp.ne.s32.totalorder %s88, %s89
      %p100 = scmp.eq.s32.totalorder %s33, 0
      %p101 = por %p99, %p100
      %p102 = scmp.ne.s32.totalorder %s88, %s89
      %p103 = scmp.eq.s32.totalorder %s34, 1
      %p104 = por %p102, %p103
      %p106 = scmp.ne.s32.totalorder %s89, %s105
      %p107 = scmp.eq.s32.totalorder %s34, 0
      %p108 = por %p106, %p107
      %s109 = ssub.s32 %s28, %s35
      %p110 = scmp.eq.s32.totalorder %s109, 0
      %s112 = sadd.s32 %s111, 1
      %s113 = scalar_select %p110, %s111, %s112
      %p116 = pneg %p110
      %p117 = scmp.eq.s32.totalorder %s28, 1
      %p118 = por %p116, %p117
      %p119 = scmp.ne.s32.totalorder %s111, %s114
      %p120 = scmp.eq.s32.totalorder %s28, 0
      %p121 = por %p119, %p120
      %p122 = scmp.ne.s32.totalorder %s111, %s114
      %p123 = scmp.eq.s32.totalorder %s33, 1
      %p124 = por %p122, %p123
      %p125 = scmp.ne.s32.totalorder %s114, %s115
      %p126 = scmp.eq.s32.totalorder %s33, 0
      %p127 = por %p125, %p126
      %p128 = scmp.ne.s32.totalorder %s114, %s115
      %p129 = scmp.eq.s32.totalorder %s34, 1
      %p130 = por %p128, %p129
      %p132 = scmp.ne.s32.totalorder %s115, %s131
      %p133 = scmp.eq.s32.totalorder %s34, 0
      %p134 = por %p132, %p133
      %s136 = sadd.s32 %s135, 1
      %p139 = scmp.eq.s32.totalorder %s28, 1
      %p140 = scmp.ne.s32.totalorder %s135, %s137
      %p141 = scmp.eq.s32.totalorder %s28, 0
      %p142 = por %p140, %p141
      %p143 = scmp.ne.s32.totalorder %s135, %s137
      %p144 = scmp.eq.s32.totalorder %s33, 1
      %p145 = por %p143, %p144
      %p146 = scmp.ne.s32.totalorder %s137, %s138
      %p147 = scmp.eq.s32.totalorder %s33, 0
      %p148 = por %p146, %p147
      %p149 = scmp.ne.s32.totalorder %s137, %s138
      %p150 = scmp.eq.s32.totalorder %s34, 1
      %p151 = por %p149, %p150
      %p153 = scmp.ne.s32.totalorder %s138, %s152
      %p154 = scmp.eq.s32.totalorder %s34, 0
      %p155 = por %p153, %p154
      %s157 = sadd.s32 %s156, 1
      %p160 = scmp.eq.s32.totalorder %s28, 1
      %p161 = scmp.ne.s32.totalorder %s156, %s158
      %p162 = scmp.eq.s32.totalorder %s28, 0
      %p163 = por %p161, %p162
      %p164 = scmp.ne.s32.totalorder %s156, %s158
      %p165 = scmp.eq.s32.totalorder %s33, 1
      %p166 = por %p164, %p165
      %p167 = scmp.ne.s32.totalorder %s158, %s159
      %p168 = scmp.eq.s32.totalorder %s33, 0
      %p169 = por %p167, %p168
      %p170 = scmp.ne.s32.totalorder %s158, %s159
      %p171 = scmp.eq.s32.totalorder %s34, 1
      %p172 = por %p170, %p171
      %p174 = scmp.ne.s32.totalorder %s159, %s173
      %p175 = scmp.eq.s32.totalorder %s34, 0
      %p176 = por %p174, %p175
      %s178 = sadd.s32 %s177, 1
      %p181 = scmp.eq.s32.totalorder %s28, 1
      %p182 = scmp.ne.s32.totalorder %s177, %s179
      %p183 = scmp.eq.s32.totalorder %s28, 0
      %p184 = por %p182, %p183
      %p185 = scmp.ne.s32.totalorder %s177, %s179
      %p186 = scmp.eq.s32.totalorder %s33, 1
      %p187 = por %p185, %p186
      %p188 = scmp.ne.s32.totalorder %s179, %s180
      %p189 = scmp.eq.s32.totalorder %s33, 0
      %p190 = por %p188, %p189
      %p191 = scmp.ne.s32.totalorder %s179, %s180
      %p192 = scmp.eq.s32.totalorder %s34, 1
      %p193 = por %p191, %p192
      %p195 = scmp.ne.s32.totalorder %s180, %s194
      %p196 = scmp.eq.s32.totalorder %s34, 0
      %p197 = por %p195, %p196
      %s199 = sadd.s32 %s198, 1
      %p202 = scmp.eq.s32.totalorder %s28, 1
      %p203 = scmp.ne.s32.totalorder %s198, %s200
      %p204 = scmp.eq.s32.totalorder %s28, 0
      %p205 = por %p203, %p204
      %p206 = scmp.ne.s32.totalorder %s198, %s200
      %p207 = scmp.eq.s32.totalorder %s33, 1
      %p208 = por %p206, %p207
      %p209 = scmp.ne.s32.totalorder %s200, %s201
      %p210 = scmp.eq.s32.totalorder %s33, 0
      %p211 = por %p209, %p210
      %p212 = scmp.ne.s32.totalorder %s200, %s201
      %p213 = scmp.eq.s32.totalorder %s34, 1
      %p214 = por %p212, %p213
      %p216 = scmp.ne.s32.totalorder %s201, %s215
      %p217 = scmp.eq.s32.totalorder %s34, 0
      %p218 = por %p216, %p217
      %s220 = sadd.s32 %s219, 1
      %p223 = scmp.eq.s32.totalorder %s28, 1
      %p224 = scmp.ne.s32.totalorder %s219, %s221
      %p225 = scmp.eq.s32.totalorder %s28, 0
      %p226 = por %p224, %p225
      %p227 = scmp.ne.s32.totalorder %s219, %s221
      %p228 = scmp.eq.s32.totalorder %s33, 1
      %p229 = por %p227, %p228
      %p230 = scmp.ne.s32.totalorder %s221, %s222
      %p231 = scmp.eq.s32.totalorder %s33, 0
      %p232 = por %p230, %p231
      %p233 = scmp.ne.s32.totalorder %s221, %s222
      %p234 = scmp.eq.s32.totalorder %s34, 1
      %p235 = por %p233, %p234
      %p237 = scmp.ne.s32.totalorder %s222, %s236
      %p238 = scmp.eq.s32.totalorder %s34, 0
      %p239 = por %p237, %p238
      %s240 = ssub.s32 %s28, %s35
      %p241 = scmp.eq.s32.totalorder %s240, 0
      %s243 = sadd.s32 %s242, 1
      %s244 = scalar_select %p241, %s242, %s243
      %p247 = pneg %p241
      %p248 = scmp.eq.s32.totalorder %s28, 1
      %p249 = por %p247, %p248
      %p250 = scmp.ne.s32.totalorder %s242, %s245
      %p251 = scmp.eq.s32.totalorder %s28, 0
      %p252 = por %p250, %p251
      %p253 = scmp.ne.s32.totalorder %s242, %s245
      %p254 = scmp.eq.s32.totalorder %s33, 1
      %p255 = por %p253, %p254
      %p256 = scmp.ne.s32.totalorder %s245, %s246
      %p257 = scmp.eq.s32.totalorder %s33, 0
      %p258 = por %p256, %p257
      %p259 = scmp.ne.s32.totalorder %s245, %s246
      %p260 = scmp.eq.s32.totalorder %s34, 1
      %p261 = por %p259, %p260
      %p263 = scmp.ne.s32.totalorder %s246, %s262
      %p264 = scmp.eq.s32.totalorder %s34, 0
      %p265 = por %p263, %p264
      %s266 = ssub.s32 %s28, %s35
      %p267 = scmp.eq.s32.totalorder %s266, 0
      %s269 = sadd.s32 %s268, 1
      %s270 = scalar_select %p267, %s268, %s269
      %p273 = pneg %p267
      %p274 = scmp.eq.s32.totalorder %s28, 1
      %p275 = por %p273, %p274
      %p276 = scmp.ne.s32.totalorder %s268, %s271
      %p277 = scmp.eq.s32.totalorder %s28, 0
      %p278 = por %p276, %p277
      %p279 = scmp.ne.s32.totalorder %s268, %s271
      %p280 = scmp.eq.s32.totalorder %s33, 1
      %p281 = por %p279, %p280
      %p282 = scmp.ne.s32.totalorder %s271, %s272
      %p283 = scmp.eq.s32.totalorder %s33, 0
      %p284 = por %p282, %p283
      %p285 = scmp.ne.s32.totalorder %s271, %s272
      %p286 = scmp.eq.s32.totalorder %s34, 1
      %p287 = por %p285, %p286
      %p289 = scmp.ne.s32.totalorder %s272, %s288
      %p290 = scmp.eq.s32.totalorder %s34, 0
      %p291 = por %p289, %p290
      %p292 = scmp.le.s32.totalorder 1, %s28
      %p293 = scmp.lt.s32.totalorder %s28, 3
      %p294 = pnand %p292, %p293
      %p295 = pneg %p294
      // Predicated region
      $region9: #{tpu_custom_call.1} parent=5 // pred_check
        _
      $region10: #{tpu_custom_call.1} parent=5 // pred_check_branch
        %297 = sbr.rel (%p294) target = $region12
      $region11: #{tpu_custom_call.1} parent=5 // pred_region
        %s298 = ssub.s32 %s28, 1
        // Predicated region
        $region13: #{tpu_custom_call.1} parent=11 // pred_check
          %p299 = pneg %p75
        $region14: #{tpu_custom_call.1} parent=11 // pred_check_branch
          %301 = sbr.rel (%p299) target = $region16
        $region15: #{tpu_custom_call.1} parent=11 // pred_region
          %s303 = ssub.s32 1024, 1024
          %304 = vsyncadd [#allocation6], %s303
          %s305 = sshll.u32 [#allocation5], 4
          %s306 = int_to_ptr.vmem [resolvable:$true] %s305
          %311 = dma.hbm_to_vmem [thread:$0]  %s1, 1024, %s306, [#allocation6], 64, 64, 4
        $region16: #{tpu_custom_call.1} parent=11 // pred_fallthru
          _
        // Predicated region
        $region17: #{tpu_custom_call.1} parent=11 // pred_check
          %p312 = pneg %p148
        $region18: #{tpu_custom_call.1} parent=11 // pred_check_branch
          %314 = sbr.rel (%p312) target = $region20
        $region19: #{tpu_custom_call.1} parent=11 // pred_region
          %s316 = ssub.s32 6144, 6144
          %317 = vsyncadd [#allocation6], %s316
          %s318 = sshll.u32 [#allocation9], 4
          %s319 = int_to_ptr.vmem [resolvable:$true] %s318
          %324 = dma.hbm_to_vmem [thread:$0]  %s4, 6144, %s319, [#allocation6], 384, 384, 24
        $region20: #{tpu_custom_call.1} parent=11 // pred_fallthru
          _
        // Predicated region
        $region21: #{tpu_custom_call.1} parent=11 // pred_check
          %p325 = pneg %p169
        $region22: #{tpu_custom_call.1} parent=11 // pred_check_branch
          %327 = sbr.rel (%p325) target = $region24
        $region23: #{tpu_custom_call.1} parent=11 // pred_region
          %s329 = ssub.s32 6144, 6144
          %330 = vsyncadd [#allocation11], %s329
          %s331 = sshll.u32 [#allocation10], 4
          %s332 = int_to_ptr.vmem [resolvable:$true] %s331
          %337 = dma.hbm_to_vmem [thread:$0]  %s5, 6144, %s332, [#allocation11], 384, 384, 24
        $region24: #{tpu_custom_call.1} parent=11 // pred_fallthru
          _
        // Predicated region
        $region25: #{tpu_custom_call.1} parent=11 // pred_check
          %p338 = pneg %p190
        $region26: #{tpu_custom_call.1} parent=11 // pred_check_branch
          %340 = sbr.rel (%p338) target = $region28
        $region27: #{tpu_custom_call.1} parent=11 // pred_region
          _
        $region28: #{tpu_custom_call.1} parent=11 // pred_fallthru
          _
        // Predicated region
        $region29: #{tpu_custom_call.1} parent=11 // pred_check
          %p341 = pneg %p211
        $region30: #{tpu_custom_call.1} parent=11 // pred_check_branch
          %343 = sbr.rel (%p341) target = $region32
        $region31: #{tpu_custom_call.1} parent=11 // pred_region
          _
        $region32: #{tpu_custom_call.1} parent=11 // pred_fallthru
          _
        // Predicated region
        $region33: #{tpu_custom_call.1} parent=11 // pred_check
          %p344 = pneg %p232
        $region34: #{tpu_custom_call.1} parent=11 // pred_check_branch
          %346 = sbr.rel (%p344) target = $region36
        $region35: #{tpu_custom_call.1} parent=11 // pred_region
          _
        $region36: #{tpu_custom_call.1} parent=11 // pred_fallthru
          _
      $region12: #{tpu_custom_call.1} parent=5 // pred_fallthru
        _
      %p347 = scmp.lt.s32.totalorder %s28, 2
      // Predicated region
      $region37: #{tpu_custom_call.1} parent=5 // pred_check
        %p348 = pneg %p347
      $region38: #{tpu_custom_call.1} parent=5 // pred_check_branch
        %350 = sbr.rel (%p348) target = $region40
      $region39: #{tpu_custom_call.1} parent=5 // pred_region
        // Predicated region
        $region41: #{tpu_custom_call.1} parent=39 // pred_check
          %p351 = pneg %p48
        $region42: #{tpu_custom_call.1} parent=39 // pred_check_branch
          %353 = sbr.rel (%p351) target = $region44
        $region43: #{tpu_custom_call.1} parent=39 // pred_region
          %s354 = sand.u32 %s28, 1
          %s355 = scalar_lea.sflag [#allocation3], %s354
          %s356 = sand.u32 %s38, 1
          %s357 = smul.addr %s356, 32
          %s358 = scalar_lea.vmem [#allocation2], %s357
          %s359 = smul.u32 8, %s28
          %s361 = ssub.s32 512, 512
          %362 = vsyncadd %s355, %s361
          %s363 = smul.addr %s359, 64
          %s364 = scalar_lea.hbm %s0, %s363
          %s365 = sshll.u32 %s358, 4
          %s366 = int_to_ptr.vmem [resolvable:$true] %s365
          %371 = dma.hbm_to_vmem [thread:$0]  %s364, 512, %s366, %s355, 64, 64, 4
        $region44: #{tpu_custom_call.1} parent=39 // pred_fallthru
          _
        // Predicated region
        $region45: #{tpu_custom_call.1} parent=39 // pred_check
          %p372 = pneg %p95
        $region46: #{tpu_custom_call.1} parent=39 // pred_check_branch
          %374 = sbr.rel (%p372) target = $region48
        $region47: #{tpu_custom_call.1} parent=39 // pred_region
          %s375 = sand.u32 %s28, 1
          %s376 = scalar_lea.sflag [#allocation3], %s375
          %s377 = sand.u32 %s85, 1
          %s378 = smul.addr %s377, 64
          %s379 = scalar_lea.vmem [#allocation7], %s378
          %s380 = smul.u32 8, %s28
          %s382 = ssub.s32 1024, 1024
          %383 = vsyncadd %s376, %s382
          %s384 = smul.addr %s380, 128
          %s385 = scalar_lea.hbm %s2, %s384
          %s386 = sshll.u32 %s379, 4
          %s387 = int_to_ptr.vmem [resolvable:$true] %s386
          %392 = dma.hbm_to_vmem [thread:$0]  %s385, 1024, %s387, %s376, 128, 128, 8
        $region48: #{tpu_custom_call.1} parent=39 // pred_fallthru
          _
        // Predicated region
        $region49: #{tpu_custom_call.1} parent=39 // pred_check
          %p393 = pneg %p121
        $region50: #{tpu_custom_call.1} parent=39 // pred_check_branch
          %395 = sbr.rel (%p393) target = $region52
        $region51: #{tpu_custom_call.1} parent=39 // pred_region
          %s396 = sand.u32 %s28, 1
          %s397 = scalar_lea.sflag [#allocation3], %s396
          %s398 = sand.u32 %s111, 1
          %s399 = smul.addr %s398, 192
          %s400 = scalar_lea.vmem [#allocation8], %s399
          %s401 = smul.u32 8, %s28
          %s403 = ssub.s32 3072, 3072
          %404 = vsyncadd %s397, %s403
          %s405 = smul.addr %s401, 3
          %s406 = smul.addr %s405, 128
          %s407 = scalar_lea.hbm %s3, %s406
          %s408 = sshll.u32 %s400, 4
          %s409 = int_to_ptr.vmem [resolvable:$true] %s408
          %414 = dma.hbm_to_vmem [thread:$0]  %s407, 3072, %s409, %s397, 384, 384, 24
        $region52: #{tpu_custom_call.1} parent=39 // pred_fallthru
          _
      $region40: #{tpu_custom_call.1} parent=5 // pred_fallthru
        _
      %p415 = scmp.le.s32.totalorder 1, %s28
      %p416 = scmp.lt.s32.totalorder %s28, 3
      %p417 = pnand %p415, %p416
      %p418 = pneg %p417
      // Predicated region
      $region53: #{tpu_custom_call.1} parent=5 // pred_check
        _
      $region54: #{tpu_custom_call.1} parent=5 // pred_check_branch
        %420 = sbr.rel (%p417) target = $region56
      $region55: #{tpu_custom_call.1} parent=5 // pred_region
        %s421 = ssub.s32 %s28, 1
        %s422 = sand.u32 %s33, 1
        %s423 = scalar_lea.sflag [#allocation3], %s422
        %s424 = sand.u32 %s41, 1
        %s425 = smul.addr %s424, 32
        %s426 = scalar_lea.vmem [#allocation2], %s425
        // Predicated region
        $region57: #{tpu_custom_call.1} parent=55 // pred_check
          %p427 = pneg %p54
        $region58: #{tpu_custom_call.1} parent=55 // pred_check_branch
          %429 = sbr.rel (%p427) target = $region60
        $region59: #{tpu_custom_call.1} parent=55 // pred_region
          %430 = dma.done %s423, 512
        $region60: #{tpu_custom_call.1} parent=55 // pred_fallthru
          _
        // Predicated region
        $region61: #{tpu_custom_call.1} parent=55 // pred_check
          %p431 = pneg %p75
        $region62: #{tpu_custom_call.1} parent=55 // pred_check_branch
          %433 = sbr.rel (%p431) target = $region64
        $region63: #{tpu_custom_call.1} parent=55 // pred_region
          %434 = dma.done [#allocation6], 1024
        $region64: #{tpu_custom_call.1} parent=55 // pred_fallthru
          _
        %s435 = sand.u32 %s33, 1
        %s436 = scalar_lea.sflag [#allocation3], %s435
        %s437 = sand.u32 %s88, 1
        %s438 = smul.addr %s437, 64
        %s439 = scalar_lea.vmem [#allocation7], %s438
        // Predicated region
        $region65: #{tpu_custom_call.1} parent=55 // pred_check
          %p440 = pneg %p101
        $region66: #{tpu_custom_call.1} parent=55 // pred_check_branch
          %442 = sbr.rel (%p440) target = $region68
        $region67: #{tpu_custom_call.1} parent=55 // pred_region
          %443 = dma.done %s436, 1024
        $region68: #{tpu_custom_call.1} parent=55 // pred_fallthru
          _
        %s444 = sand.u32 %s33, 1
        %s445 = scalar_lea.sflag [#allocation3], %s444
        %s446 = sand.u32 %s114, 1
        %s447 = smul.addr %s446, 192
        %s448 = scalar_lea.vmem [#allocation8], %s447
        // Predicated region
        $region69: #{tpu_custom_call.1} parent=55 // pred_check
          %p449 = pneg %p127
        $region70: #{tpu_custom_call.1} parent=55 // pred_check_branch
          %451 = sbr.rel (%p449) target = $region72
        $region71: #{tpu_custom_call.1} parent=55 // pred_region
          %452 = dma.done %s445, 3072
        $region72: #{tpu_custom_call.1} parent=55 // pred_fallthru
          _
        // Predicated region
        $region73: #{tpu_custom_call.1} parent=55 // pred_check
          %p453 = pneg %p148
        $region74: #{tpu_custom_call.1} parent=55 // pred_check_branch
          %455 = sbr.rel (%p453) target = $region76
        $region75: #{tpu_custom_call.1} parent=55 // pred_region
          %456 = dma.done [#allocation6], 6144
        $region76: #{tpu_custom_call.1} parent=55 // pred_fallthru
          _
        // Predicated region
        $region77: #{tpu_custom_call.1} parent=55 // pred_check
          %p457 = pneg %p169
        $region78: #{tpu_custom_call.1} parent=55 // pred_check_branch
          %459 = sbr.rel (%p457) target = $region80
        $region79: #{tpu_custom_call.1} parent=55 // pred_region
          %460 = dma.done [#allocation11], 6144
        $region80: #{tpu_custom_call.1} parent=55 // pred_fallthru
          _
        %s461 = sand.u32 %s33, 1
        %s462 = scalar_lea.sflag [#allocation3], %s461
        %s463 = sand.u32 %s41, 1
        %s464 = smul.addr %s463, 32
        %s465 = scalar_lea.vmem [#allocation2], %s464
        %p466 = pneg %p54
        %p467 = pneg %p51
        %p468 = pneg %p75
        %p469 = pneg %p72
        %s470 = sand.u32 %s33, 1
        %s471 = scalar_lea.sflag [#allocation3], %s470
        %s472 = sand.u32 %s88, 1
        %s473 = smul.addr %s472, 64
        %s474 = scalar_lea.vmem [#allocation7], %s473
        %p475 = pneg %p101
        %p476 = pneg %p98
        %s477 = sand.u32 %s33, 1
        %s478 = scalar_lea.sflag [#allocation3], %s477
        %s479 = sand.u32 %s114, 1
        %s480 = smul.addr %s479, 192
        %s481 = scalar_lea.vmem [#allocation8], %s480
        %p482 = pneg %p127
        %p483 = pneg %p124
        %p484 = pneg %p148
        %p485 = pneg %p145
        %p486 = pneg %p169
        %p487 = pneg %p166
        %p488 = pneg %p190
        %p489 = pneg %p187
        %p490 = pneg %p211
        %p491 = pneg %p208
        %p492 = pneg %p232
        %p493 = pneg %p229
        %p494 = pneg %p258
        %p495 = pneg %p255
        %s496 = sand.u32 %s245, 1
        %s497 = scalar_lea.sflag [#allocation4], %s496
        %s498 = sand.u32 %s245, 1
        %s499 = smul.addr %s498, 64
        %s500 = scalar_lea.vmem [#allocation12], %s499
        %p501 = pneg %p284
        %p502 = pneg %p281
        %s503 = sand.u32 %s271, 1
        %s504 = scalar_lea.sflag [#allocation14], %s503
        %s505 = sand.u32 %s271, 1
        %s506 = smul.addr %s505, 32
        %s507 = scalar_lea.vmem [#allocation13], %s506
        %s508 = smul.u32 8, %s33
        %s509 = smul.u32 8, %s33
        %s510 = smul.u32 8, %s33
        %s511 = smul.u32 8, %s33
        %s512 = smul.u32 8, %s33
        %v514 = vld [vmem:[%s426] sm:$0xf]
        %v515 = vld [vmem:[%s426 + $0x4] sm:$0xf]
        %v516 = vld [vmem:[%s426 + $0x8] sm:$0xf]
        %v517 = vld [vmem:[%s426 + $0xc] sm:$0xf]
        %v518 = vld [vmem:[%s426 + $0x10] sm:$0xf]
        %v519 = vld [vmem:[%s426 + $0x14] sm:$0xf]
        %v520 = vld [vmem:[%s426 + $0x18] sm:$0xf]
        %v521 = vld [vmem:[%s426 + $0x1c] sm:$0xf]
        %v522 = vld [vmem:[#allocation5] sm:$0xf]
        %v523 = vld [vmem:[#allocation5 + $0x4] sm:$0xf]
        %v524 = vld [vmem:[#allocation5 + $0x8] sm:$0xf]
        %v525 = vld [vmem:[#allocation5 + $0xc] sm:$0xf]
        %v526 = vld [vmem:[#allocation5 + $0x10] sm:$0xf]
        %v527 = vld [vmem:[#allocation5 + $0x14] sm:$0xf]
        %v528 = vld [vmem:[#allocation5 + $0x18] sm:$0xf]
        %v529 = vld [vmem:[#allocation5 + $0x1c] sm:$0xf]
        %v530 = vld [vmem:[#allocation5 + $0x20] sm:$0xf]
        %v531 = vld [vmem:[#allocation5 + $0x24] sm:$0xf]
        %v532 = vld [vmem:[#allocation5 + $0x28] sm:$0xf]
        %v533 = vld [vmem:[#allocation5 + $0x2c] sm:$0xf]
        %v534 = vld [vmem:[#allocation5 + $0x30] sm:$0xf]
        %v535 = vld [vmem:[#allocation5 + $0x34] sm:$0xf]
        %v536 = vld [vmem:[#allocation5 + $0x38] sm:$0xf]
        %v537 = vld [vmem:[#allocation5 + $0x3c] sm:$0xf]
        %v546 = vunpack.c.l.b16 %v514
        %v547 = vunpack.c.l.b16 %v515
        %v548 = vunpack.c.l.b16 %v516
        %v549 = vunpack.c.l.b16 %v517
        %v550 = vunpack.c.l.b16 %v518
        %v551 = vunpack.c.l.b16 %v519
        %v552 = vunpack.c.l.b16 %v520
        %v553 = vunpack.c.l.b16 %v521
        %v554 = vpack.c.b16 %v547, %v546
        %v555 = vpack.c.b16 %v549, %v548
        %v556 = vpack.c.b16 %v551, %v550
        %v557 = vpack.c.b16 %v553, %v552
        %v578 = vunpack.c.l.b16 %v522
        %v579 = vunpack.c.l.b16 %v523
        %v580 = vunpack.c.l.b16 %v524
        %v581 = vunpack.c.l.b16 %v525
        %v582 = vunpack.c.l.b16 %v526
        %v583 = vunpack.c.l.b16 %v527
        %v584 = vunpack.c.l.b16 %v528
        %v585 = vunpack.c.l.b16 %v529
        %v586 = vunpack.c.l.b16 %v530
        %v587 = vunpack.c.l.b16 %v531
        %v588 = vunpack.c.l.b16 %v532
        %v589 = vunpack.c.l.b16 %v533
        %v590 = vunpack.c.l.b16 %v534
        %v591 = vunpack.c.l.b16 %v535
        %v592 = vunpack.c.l.b16 %v536
        %v593 = vunpack.c.l.b16 %v537
        %v594 = vpack.c.b16 %v579, %v578
        %v595 = vpack.c.b16 %v581, %v580
        %v596 = vpack.c.b16 %v583, %v582
        %v597 = vpack.c.b16 %v585, %v584
        %v598 = vpack.c.b16 %v587, %v586
        %v599 = vpack.c.b16 %v589, %v588
        %v600 = vpack.c.b16 %v591, %v590
        %v601 = vpack.c.b16 %v593, %v592
        %610 = vmatprep.subr.bf16.mxu0 0
        %611 = vmatpush1.bf16.msra.mxu0 %v594
        %612 = vmatprep.subr.bf16.mxu0 0
        %613 = vmatpush1.bf16.msra.mxu0 %v595
        %614 = vmatprep.subr.bf16.mxu0 0
        %615 = vmatpush1.bf16.msra.mxu0 %v596
        %616 = vmatprep.subr.bf16.mxu0 0
        %617 = vmatpush1.bf16.msra.mxu0 %v597
        %618 = vmatprep.subr.bf16.mxu0 0
        %619 = vmatpush1.bf16.msra.mxu0 %v598
        %620 = vmatprep.subr.bf16.mxu0 0
        %621 = vmatpush1.bf16.msra.mxu0 %v599
        %622 = vmatprep.subr.bf16.mxu0 0
        %623 = vmatpush1.bf16.msra.mxu0 %v600
        %624 = vmatprep.subr.bf16.mxu0 0
        %625 = vmatpush1.bf16.msra.mxu0 %v601
        %626 = vmatprep.subr.bf16.mxu0 0
        %627 = vmatpush1.bf16.msra.mxu0 0
        %628 = vmatprep.subr.bf16.mxu0 0
        %629 = vmatpush1.bf16.msra.mxu0 0
        %630 = vmatprep.subr.bf16.mxu0 0
        %631 = vmatpush1.bf16.msra.mxu0 0
        %632 = vmatprep.subr.bf16.mxu0 0
        %633 = vmatpush1.bf16.msra.mxu0 0
        %634 = vmatprep.subr.bf16.mxu0 0
        %635 = vmatpush1.bf16.msra.mxu0 0
        %636 = vmatprep.subr.bf16.mxu0 0
        %637 = vmatpush1.bf16.msra.mxu0 0
        %638 = vmatprep.subr.bf16.mxu0 0
        %639 = vmatpush1.bf16.msra.mxu0 0
        %640 = vmatprep.subr.bf16.mxu0 0
        %641 = vmatpush1.bf16.msra.mxu0 0
        %642 = vmatprep.mubr.bf16.mxu0 0
        %643 = vmatmul.mubr.bf16.gmra.mrb[0].mxu0 %v554
        %v644 = vpop.f32.mrb[0].mxu0
        %v645 = vadd.f32 0.0, %v644
        %v646 = vpop.f32.mrb[0].mxu0
        %v647 = vpop.f32.mrb[0].mxu0
        %v648 = vadd.f32 0.0, %v647
        %v649 = vpop.f32.mrb[0].mxu0
        %650 = vmatprep.mubr.bf16.mxu0 0
        %651 = vmatmul.mubr.bf16.gmra.mrb[0].mxu0 %v555
        %v652 = vpop.f32.mrb[0].mxu0
        %v653 = vadd.f32 0.0, %v652
        %v654 = vpop.f32.mrb[0].mxu0
        %v655 = vpop.f32.mrb[0].mxu0
        %v656 = vadd.f32 0.0, %v655
        %v657 = vpop.f32.mrb[0].mxu0
        %658 = vmatprep.mubr.bf16.mxu0 0
        %659 = vmatmul.mubr.bf16.gmra.mrb[0].mxu0 %v556
        %v660 = vpop.f32.mrb[0].mxu0
        %v661 = vadd.f32 0.0, %v660
        %v662 = vpop.f32.mrb[0].mxu0
        %v663 = vpop.f32.mrb[0].mxu0
        %v664 = vadd.f32 0.0, %v663
        %v665 = vpop.f32.mrb[0].mxu0
        %666 = vmatprep.mubr.bf16.mxu0 0
        %667 = vmatmul.mubr.bf16.gmra.mrb[0].mxu0 %v557
        %v668 = vpop.f32.mrb[0].mxu0
        %v669 = vadd.f32 0.0, %v668
        %v670 = vpop.f32.mrb[0].mxu0
        %v671 = vpop.f32.mrb[0].mxu0
        %v672 = vadd.f32 0.0, %v671
        %v673 = vpop.f32.mrb[0].mxu0
        %674 = vdwg.mxu0
        %v675 = vld [vmem:[%s448] sm:$0xff]
        %v676 = vld [vmem:[%s448 + $0x8] sm:$0xff]
        %v677 = vld [vmem:[%s448 + $0x10] sm:$0xff]
        %v678 = vld [vmem:[%s448 + $0x18] sm:$0xff]
        %v679 = vld [vmem:[%s448 + $0x20] sm:$0xff]
        %v680 = vld [vmem:[%s448 + $0x28] sm:$0xff]
        %v681 = vld [vmem:[%s448 + $0x30] sm:$0xff]
        %v682 = vld [vmem:[%s448 + $0x38] sm:$0xff]
        %v683 = vld [vmem:[%s448 + $0x40] sm:$0xff]
        %v684 = vld [vmem:[%s448 + $0x48] sm:$0xff]
        %v685 = vld [vmem:[%s448 + $0x50] sm:$0xff]
        %v686 = vld [vmem:[%s448 + $0x58] sm:$0xff]
        %v687 = vld [vmem:[%s448 + $0x60] sm:$0xff]
        %v688 = vld [vmem:[%s448 + $0x68] sm:$0xff]
        %v689 = vld [vmem:[%s448 + $0x70] sm:$0xff]
        %v690 = vld [vmem:[%s448 + $0x78] sm:$0xff]
        %v691 = vld [vmem:[%s448 + $0x80] sm:$0xff]
        %v692 = vld [vmem:[%s448 + $0x88] sm:$0xff]
        %v693 = vld [vmem:[%s448 + $0x90] sm:$0xff]
        %v694 = vld [vmem:[%s448 + $0x98] sm:$0xff]
        %v695 = vld [vmem:[%s448 + $0xa0] sm:$0xff]
        %v696 = vld [vmem:[%s448 + $0xa8] sm:$0xff]
        %v697 = vld [vmem:[%s448 + $0xb0] sm:$0xff]
        %v698 = vld [vmem:[%s448 + $0xb8] sm:$0xff]
        %v699 = vld [vmem:[#allocation9] sm:$0xff]
        %v700 = vld [vmem:[#allocation9 + $0x8] sm:$0xff]
        %v701 = vld [vmem:[#allocation9 + $0x10] sm:$0xff]
        %v702 = vld [vmem:[#allocation9 + $0x18] sm:$0xff]
        %v703 = vld [vmem:[#allocation9 + $0x20] sm:$0xff]
        %v704 = vld [vmem:[#allocation9 + $0x28] sm:$0xff]
        %v705 = vld [vmem:[#allocation9 + $0x30] sm:$0xff]
        %v706 = vld [vmem:[#allocation9 + $0x38] sm:$0xff]
        %v707 = vld [vmem:[#allocation9 + $0x40] sm:$0xff]
        %v708 = vld [vmem:[#allocation9 + $0x48] sm:$0xff]
        %v709 = vld [vmem:[#allocation9 + $0x50] sm:$0xff]
        %v710 = vld [vmem:[#allocation9 + $0x58] sm:$0xff]
        %v711 = vld [vmem:[#allocation9 + $0x60] sm:$0xff]
        %v712 = vld [vmem:[#allocation9 + $0x68] sm:$0xff]
        %v713 = vld [vmem:[#allocation9 + $0x70] sm:$0xff]
        %v714 = vld [vmem:[#allocation9 + $0x78] sm:$0xff]
        %v715 = vld [vmem:[#allocation9 + $0x80] sm:$0xff]
        %v716 = vld [vmem:[#allocation9 + $0x88] sm:$0xff]
        %v717 = vld [vmem:[#allocation9 + $0x90] sm:$0xff]
        %v718 = vld [vmem:[#allocation9 + $0x98] sm:$0xff]
        %v719 = vld [vmem:[#allocation9 + $0xa0] sm:$0xff]
        %v720 = vld [vmem:[#allocation9 + $0xa8] sm:$0xff]
        %v721 = vld [vmem:[#allocation9 + $0xb0] sm:$0xff]
        %v722 = vld [vmem:[#allocation9 + $0xb8] sm:$0xff]
        %v723 = vld [vmem:[#allocation9 + $0xc0] sm:$0xff]
        %v724 = vld [vmem:[#allocation9 + $0xc8] sm:$0xff]
        %v725 = vld [vmem:[#allocation9 + $0xd0] sm:$0xff]
        %v726 = vld [vmem:[#allocation9 + $0xd8] sm:$0xff]
        %v727 = vld [vmem:[#allocation9 + $0xe0] sm:$0xff]
        %v728 = vld [vmem:[#allocation9 + $0xe8] sm:$0xff]
        %v729 = vld [vmem:[#allocation9 + $0xf0] sm:$0xff]
        %v730 = vld [vmem:[#allocation9 + $0xf8] sm:$0xff]
        %v731 = vld [vmem:[#allocation9 + $0x100] sm:$0xff]
        %v732 = vld [vmem:[#allocation9 + $0x108] sm:$0xff]
        %v733 = vld [vmem:[#allocation9 + $0x110] sm:$0xff]
        %v734 = vld [vmem:[#allocation9 + $0x118] sm:$0xff]
        %v735 = vld [vmem:[#allocation9 + $0x120] sm:$0xff]
        %v736 = vld [vmem:[#allocation9 + $0x128] sm:$0xff]
        %v737 = vld [vmem:[#allocation9 + $0x130] sm:$0xff]
        %v738 = vld [vmem:[#allocation9 + $0x138] sm:$0xff]
        %v739 = vld [vmem:[#allocation9 + $0x140] sm:$0xff]
        %v740 = vld [vmem:[#allocation9 + $0x148] sm:$0xff]
        %v741 = vld [vmem:[#allocation9 + $0x150] sm:$0xff]
        %v742 = vld [vmem:[#allocation9 + $0x158] sm:$0xff]
        %v743 = vld [vmem:[#allocation9 + $0x160] sm:$0xff]
        %v744 = vld [vmem:[#allocation9 + $0x168] sm:$0xff]
        %v745 = vld [vmem:[#allocation9 + $0x170] sm:$0xff]
        %v746 = vld [vmem:[#allocation9 + $0x178] sm:$0xff]
        %747 = vmatprep.subr.mxu0 %v700
        %748 = vmatpush1.msra.mxu0 %v699
        %749 = vmatprep.subr.mxu0 %v703
        %750 = vmatpush1.msra.mxu0 %v702
        %751 = vmatprep.subr.mxu0 %v706
        %752 = vmatpush1.msra.mxu0 %v705
        %753 = vmatprep.subr.mxu0 %v709
        %754 = vmatpush1.msra.mxu0 %v708
        %755 = vmatprep.subr.mxu0 %v712
        %756 = vmatpush1.msra.mxu0 %v711
        %757 = vmatprep.subr.mxu0 %v715
        %758 = vmatpush1.msra.mxu0 %v714
        %759 = vmatprep.subr.mxu0 %v718
        %760 = vmatpush1.msra.mxu0 %v717
        %761 = vmatprep.subr.mxu0 %v721
        %762 = vmatpush1.msra.mxu0 %v720
        %763 = vmatprep.subr.mxu0 %v724
        %764 = vmatpush1.msra.mxu0 %v723
        %765 = vmatprep.subr.mxu0 %v727
        %766 = vmatpush1.msra.mxu0 %v726
        %767 = vmatprep.subr.mxu0 %v730
        %768 = vmatpush1.msra.mxu0 %v729
        %769 = vmatprep.subr.mxu0 %v733
        %770 = vmatpush1.msra.mxu0 %v732
        %771 = vmatprep.subr.mxu0 %v736
        %772 = vmatpush1.msra.mxu0 %v735
        %773 = vmatprep.subr.mxu0 %v739
        %774 = vmatpush1.msra.mxu0 %v738
        %775 = vmatprep.subr.mxu0 %v742
        %776 = vmatpush1.msra.mxu0 %v741
        %777 = vmatprep.subr.mxu0 %v745
        %778 = vmatpush1.msra.mxu0 %v744
        %779 = vmatprep.subr.mxu0 0.0
        %780 = vmatpush1.msra.mxu0 0.0
        %781 = vmatprep.subr.mxu0 0.0
        %782 = vmatpush1.msra.mxu0 0.0
        %783 = vmatprep.subr.mxu0 0.0
        %784 = vmatpush1.msra.mxu0 0.0
        %785 = vmatprep.subr.mxu0 0.0
        %786 = vmatpush1.msra.mxu0 0.0
        %787 = vmatprep.subr.mxu0 0.0
        %788 = vmatpush1.msra.mxu0 0.0
        %789 = vmatprep.subr.mxu0 0.0
        %790 = vmatpush1.msra.mxu0 0.0
        %791 = vmatprep.subr.mxu0 0.0
        %792 = vmatpush1.msra.mxu0 0.0
        %793 = vmatprep.subr.mxu0 0.0
        %794 = vmatpush1.msra.mxu0 0.0
        %795 = vmatprep.subr.mxu0 0.0
        %796 = vmatpush1.msra.mxu0 0.0
        %797 = vmatprep.subr.mxu0 0.0
        %798 = vmatpush1.msra.mxu0 0.0
        %799 = vmatprep.subr.mxu0 0.0
        %800 = vmatpush1.msra.mxu0 0.0
        %801 = vmatprep.subr.mxu0 0.0
        %802 = vmatpush1.msra.mxu0 0.0
        %803 = vmatprep.subr.mxu0 0.0
        %804 = vmatpush1.msra.mxu0 0.0
        %805 = vmatprep.subr.mxu0 0.0
        %806 = vmatpush1.msra.mxu0 0.0
        %807 = vmatprep.subr.mxu0 0.0
        %808 = vmatpush1.msra.mxu0 0.0
        %809 = vmatprep.subr.mxu0 0.0
        %810 = vmatpush1.msra.mxu0 0.0
        %811 = vmatprep.mubr.f32.mxu0 0.0
        %812 = vmatmul.mubr.f32.gmra.mrb[0].mxu0 %v645
        %v813 = vpop.f32.mrb[0].mxu0
        %v814 = vadd.f32 0.0, %v813
        %v815 = vpop.f32.mrb[0].mxu0
        %v816 = vadd.f32 0.0, %v815
        %817 = vmatprep.mubr.f32.mxu0 0.0
        %818 = vmatmul.mubr.f32.gmra.mrb[0].mxu0 %v648
        %v819 = vpop.f32.mrb[0].mxu0
        %v820 = vadd.f32 0.0, %v819
        %v821 = vpop.f32.mrb[0].mxu0
        %v822 = vadd.f32 0.0, %v821
        %823 = vmatprep.mubr.f32.mxu0 0.0
        %824 = vmatmul.mubr.f32.gmra.mrb[0].mxu0 %v653
        %v825 = vpop.f32.mrb[0].mxu0
        %v826 = vadd.f32 0.0, %v825
        %v827 = vpop.f32.mrb[0].mxu0
        %v828 = vadd.f32 0.0, %v827
        %829 = vmatprep.mubr.f32.mxu0 0.0
        %830 = vmatmul.mubr.f32.gmra.mrb[0].mxu0 %v656
        %v831 = vpop.f32.mrb[0].mxu0
        %v832 = vadd.f32 0.0, %v831
        %v833 = vpop.f32.mrb[0].mxu0
        %v834 = vadd.f32 0.0, %v833
        %835 = vmatprep.mubr.f32.mxu0 0.0
        %836 = vmatmul.mubr.f32.gmra.mrb[0].mxu0 %v661
        %v837 = vpop.f32.mrb[0].mxu0
        %v838 = vadd.f32 0.0, %v837
        %v839 = vpop.f32.mrb[0].mxu0
        %v840 = vadd.f32 0.0, %v839
        %841 = vmatprep.mubr.f32.mxu0 0.0
        %842 = vmatmul.mubr.f32.gmra.mrb[0].mxu0 %v664
        %v843 = vpop.f32.mrb[0].mxu0
        %v844 = vadd.f32 0.0, %v843
        %v845 = vpop.f32.mrb[0].mxu0
        %v846 = vadd.f32 0.0, %v845
        %847 = vmatprep.mubr.f32.mxu0 0.0
        %848 = vmatmul.mubr.f32.gmra.mrb[0].mxu0 %v669
        %v849 = vpop.f32.mrb[0].mxu0
        %v850 = vadd.f32 0.0, %v849
        %v851 = vpop.f32.mrb[0].mxu0
        %v852 = vadd.f32 0.0, %v851
        %853 = vmatprep.mubr.f32.mxu0 0.0
        %854 = vmatmul.mubr.f32.gmra.mrb[0].mxu0 %v672
        %v855 = vpop.f32.mrb[0].mxu0
        %v856 = vadd.f32 0.0, %v855
        %v857 = vpop.f32.mrb[0].mxu0
        %v858 = vadd.f32 0.0, %v857
        %859 = vdwg.mxu0
        %860 = vmatprep.subr.mxu0 0.0
        %861 = vmatpush1.msra.mxu0 %v701
        %862 = vmatprep.subr.mxu0 0.0
        %863 = vmatpush1.msra.mxu0 %v704
        %864 = vmatprep.subr.mxu0 0.0
        %865 = vmatpush1.msra.mxu0 %v707
        %866 = vmatprep.subr.mxu0 0.0
        %867 = vmatpush1.msra.mxu0 %v710
        %868 = vmatprep.subr.mxu0 0.0
        %869 = vmatpush1.msra.mxu0 %v713
        %870 = vmatprep.subr.mxu0 0.0
        %871 = vmatpush1.msra.mxu0 %v716
        %872 = vmatprep.subr.mxu0 0.0
        %873 = vmatpush1.msra.mxu0 %v719
        %874 = vmatprep.subr.mxu0 0.0
        %875 = vmatpush1.msra.mxu0 %v722
        %876 = vmatprep.subr.mxu0 0.0
        %877 = vmatpush1.msra.mxu0 %v725
        %878 = vmatprep.subr.mxu0 0.0
        %879 = vmatpush1.msra.mxu0 %v728
        %880 = vmatprep.subr.mxu0 0.0
        %881 = vmatpush1.msra.mxu0 %v731
        %882 = vmatprep.subr.mxu0 0.0
        %883 = vmatpush1.msra.mxu0 %v734
        %884 = vmatprep.subr.mxu0 0.0
        %885 = vmatpush1.msra.mxu0 %v737
        %886 = vmatprep.subr.mxu0 0.0
        %887 = vmatpush1.msra.mxu0 %v740
        %888 = vmatprep.subr.mxu0 0.0
        %889 = vmatpush1.msra.mxu0 %v743
        %890 = vmatprep.subr.mxu0 0.0
        %891 = vmatpush1.msra.mxu0 %v746
        %892 = vmatprep.subr.mxu0 0.0
        %893 = vmatpush1.msra.mxu0 0.0
        %894 = vmatprep.subr.mxu0 0.0
        %895 = vmatpush1.msra.mxu0 0.0
        %896 = vmatprep.subr.mxu0 0.0
        %897 = vmatpush1.msra.mxu0 0.0
        %898 = vmatprep.subr.mxu0 0.0
        %899 = vmatpush1.msra.mxu0 0.0
        %900 = vmatprep.subr.mxu0 0.0
        %901 = vmatpush1.msra.mxu0 0.0
        %902 = vmatprep.subr.mxu0 0.0
        %903 = vmatpush1.msra.mxu0 0.0
        %904 = vmatprep.subr.mxu0 0.0
        %905 = vmatpush1.msra.mxu0 0.0
        %906 = vmatprep.subr.mxu0 0.0
        %907 = vmatpush1.msra.mxu0 0.0
        %908 = vmatprep.subr.mxu0 0.0
        %909 = vmatpush1.msra.mxu0 0.0
        %910 = vmatprep.subr.mxu0 0.0
        %911 = vmatpush1.msra.mxu0 0.0
        %912 = vmatprep.subr.mxu0 0.0
        %913 = vmatpush1.msra.mxu0 0.0
        %914 = vmatprep.subr.mxu0 0.0
        %915 = vmatpush1.msra.mxu0 0.0
        %916 = vmatprep.subr.mxu0 0.0
        %917 = vmatpush1.msra.mxu0 0.0
        %918 = vmatprep.subr.mxu0 0.0
        %919 = vmatpush1.msra.mxu0 0.0
        %920 = vmatprep.subr.mxu0 0.0
        %921 = vmatpush1.msra.mxu0 0.0
        %922 = vmatprep.subr.mxu0 0.0
        %923 = vmatpush1.msra.mxu0 0.0
        %924 = vmatprep.mubr.f32.mxu0 0.0
        %925 = vmatmul.mubr.f32.gmra.mrb[0].mxu0 %v645
        %v926 = vpop.f32.mrb[0].mxu0
        %v927 = vadd.f32 0.0, %v926
        %v928 = vpop.f32.mrb[0].mxu0
        %929 = vmatprep.mubr.f32.mxu0 0.0
        %930 = vmatmul.mubr.f32.gmra.mrb[0].mxu0 %v648
        %v931 = vpop.f32.mrb[0].mxu0
        %v932 = vadd.f32 0.0, %v931
        %v933 = vpop.f32.mrb[0].mxu0
        %934 = vmatprep.mubr.f32.mxu0 0.0
        %935 = vmatmul.mubr.f32.gmra.mrb[0].mxu0 %v653
        %v936 = vpop.f32.mrb[0].mxu0
        %v937 = vadd.f32 0.0, %v936
        %v938 = vpop.f32.mrb[0].mxu0
        %939 = vmatprep.mubr.f32.mxu0 0.0
        %940 = vmatmul.mubr.f32.gmra.mrb[0].mxu0 %v656
        %v941 = vpop.f32.mrb[0].mxu0
        %v942 = vadd.f32 0.0, %v941
        %v943 = vpop.f32.mrb[0].mxu0
        %944 = vmatprep.mubr.f32.mxu0 0.0
        %945 = vmatmul.mubr.f32.gmra.mrb[0].mxu0 %v661
        %v946 = vpop.f32.mrb[0].mxu0
        %v947 = vadd.f32 0.0, %v946
        %v948 = vpop.f32.mrb[0].mxu0
        %949 = vmatprep.mubr.f32.mxu0 0.0
        %950 = vmatmul.mubr.f32.gmra.mrb[0].mxu0 %v664
        %v951 = vpop.f32.mrb[0].mxu0
        %v952 = vadd.f32 0.0, %v951
        %v953 = vpop.f32.mrb[0].mxu0
        %954 = vmatprep.mubr.f32.mxu0 0.0
        %955 = vmatmul.mubr.f32.gmra.mrb[0].mxu0 %v669
        %v956 = vpop.f32.mrb[0].mxu0
        %v957 = vadd.f32 0.0, %v956
        %v958 = vpop.f32.mrb[0].mxu0
        %959 = vmatprep.mubr.f32.mxu0 0.0
        %960 = vmatmul.mubr.f32.gmra.mrb[0].mxu0 %v672
        %v961 = vpop.f32.mrb[0].mxu0
        %v962 = vadd.f32 0.0, %v961
        %v963 = vpop.f32.mrb[0].mxu0
        %964 = vdwg.mxu0
        %v965 = vadd.f32 %v675, %v814
        %v966 = vadd.f32 %v676, %v816
        %v967 = vadd.f32 %v677, %v927
        %v968 = vadd.f32 %v678, %v820
        %v969 = vadd.f32 %v679, %v822
        %v970 = vadd.f32 %v680, %v932
        %v971 = vadd.f32 %v681, %v826
        %v972 = vadd.f32 %v682, %v828
        %v973 = vadd.f32 %v683, %v937
        %v974 = vadd.f32 %v684, %v832
        %v975 = vadd.f32 %v685, %v834
        %v976 = vadd.f32 %v686, %v942
        %v977 = vadd.f32 %v687, %v838
        %v978 = vadd.f32 %v688, %v840
        %v979 = vadd.f32 %v689, %v947
        %v980 = vadd.f32 %v690, %v844
        %v981 = vadd.f32 %v691, %v846
        %v982 = vadd.f32 %v692, %v952
        %v983 = vadd.f32 %v693, %v850
        %v984 = vadd.f32 %v694, %v852
        %v985 = vadd.f32 %v695, %v957
        %v986 = vadd.f32 %v696, %v856
        %v987 = vadd.f32 %v697, %v858
        %v988 = vadd.f32 %v698, %v962
        %v989 = vld [vmem:[%s439] sm:$0xff]
        %v990 = vld [vmem:[%s439 + $0x8] sm:$0xff]
        %v991 = vld [vmem:[%s439 + $0x10] sm:$0xff]
        %v992 = vld [vmem:[%s439 + $0x18] sm:$0xff]
        %v993 = vld [vmem:[%s439 + $0x20] sm:$0xff]
        %v994 = vld [vmem:[%s439 + $0x28] sm:$0xff]
        %v995 = vld [vmem:[%s439 + $0x30] sm:$0xff]
        %v996 = vld [vmem:[%s439 + $0x38] sm:$0xff]
        %v997 = vld [vmem:[#allocation10] sm:$0xff]
        %v998 = vld [vmem:[#allocation10 + $0x8] sm:$0xff]
        %v999 = vld [vmem:[#allocation10 + $0x10] sm:$0xff]
        %v1000 = vld [vmem:[#allocation10 + $0x18] sm:$0xff]
        %v1001 = vld [vmem:[#allocation10 + $0x20] sm:$0xff]
        %v1002 = vld [vmem:[#allocation10 + $0x28] sm:$0xff]
        %v1003 = vld [vmem:[#allocation10 + $0x30] sm:$0xff]
        %v1004 = vld [vmem:[#allocation10 + $0x38] sm:$0xff]
        %v1005 = vld [vmem:[#allocation10 + $0x40] sm:$0xff]
        %v1006 = vld [vmem:[#allocation10 + $0x48] sm:$0xff]
        %v1007 = vld [vmem:[#allocation10 + $0x50] sm:$0xff]
        %v1008 = vld [vmem:[#allocation10 + $0x58] sm:$0xff]
        %v1009 = vld [vmem:[#allocation10 + $0x60] sm:$0xff]
        %v1010 = vld [vmem:[#allocation10 + $0x68] sm:$0xff]
        %v1011 = vld [vmem:[#allocation10 + $0x70] sm:$0xff]
        %v1012 = vld [vmem:[#allocation10 + $0x78] sm:$0xff]
        %v1013 = vld [vmem:[#allocation10 + $0x80] sm:$0xff]
        %v1014 = vld [vmem:[#allocation10 + $0x88] sm:$0xff]
        %v1015 = vld [vmem:[#allocation10 + $0x90] sm:$0xff]
        %v1016 = vld [vmem:[#allocation10 + $0x98] sm:$0xff]
        %v1017 = vld [vmem:[#allocation10 + $0xa0] sm:$0xff]
        %v1018 = vld [vmem:[#allocation10 + $0xa8] sm:$0xff]
        %v1019 = vld [vmem:[#allocation10 + $0xb0] sm:$0xff]
        %v1020 = vld [vmem:[#allocation10 + $0xb8] sm:$0xff]
        %v1021 = vld [vmem:[#allocation10 + $0xc0] sm:$0xff]
        %v1022 = vld [vmem:[#allocation10 + $0xc8] sm:$0xff]
        %v1023 = vld [vmem:[#allocation10 + $0xd0] sm:$0xff]
        %v1024 = vld [vmem:[#allocation10 + $0xd8] sm:$0xff]
        %v1025 = vld [vmem:[#allocation10 + $0xe0] sm:$0xff]
        %v1026 = vld [vmem:[#allocation10 + $0xe8] sm:$0xff]
        %v1027 = vld [vmem:[#allocation10 + $0xf0] sm:$0xff]
        %v1028 = vld [vmem:[#allocation10 + $0xf8] sm:$0xff]
        %v1029 = vld [vmem:[#allocation10 + $0x100] sm:$0xff]
        %v1030 = vld [vmem:[#allocation10 + $0x108] sm:$0xff]
        %v1031 = vld [vmem:[#allocation10 + $0x110] sm:$0xff]
        %v1032 = vld [vmem:[#allocation10 + $0x118] sm:$0xff]
        %v1033 = vld [vmem:[#allocation10 + $0x120] sm:$0xff]
        %v1034 = vld [vmem:[#allocation10 + $0x128] sm:$0xff]
        %v1035 = vld [vmem:[#allocation10 + $0x130] sm:$0xff]
        %v1036 = vld [vmem:[#allocation10 + $0x138] sm:$0xff]
        %v1037 = vld [vmem:[#allocation10 + $0x140] sm:$0xff]
        %v1038 = vld [vmem:[#allocation10 + $0x148] sm:$0xff]
        %v1039 = vld [vmem:[#allocation10 + $0x150] sm:$0xff]
        %v1040 = vld [vmem:[#allocation10 + $0x158] sm:$0xff]
        %v1041 = vld [vmem:[#allocation10 + $0x160] sm:$0xff]
        %v1042 = vld [vmem:[#allocation10 + $0x168] sm:$0xff]
        %v1043 = vld [vmem:[#allocation10 + $0x170] sm:$0xff]
        %v1044 = vld [vmem:[#allocation10 + $0x178] sm:$0xff]
        %1045 = vmatprep.subr.mxu0 %v998
        %1046 = vmatpush1.msra.mxu0 %v997
        %1047 = vmatprep.subr.mxu0 %v1001
        %1048 = vmatpush1.msra.mxu0 %v1000
        %1049 = vmatprep.subr.mxu0 %v1004
        %1050 = vmatpush1.msra.mxu0 %v1003
        %1051 = vmatprep.subr.mxu0 %v1007
        %1052 = vmatpush1.msra.mxu0 %v1006
        %1053 = vmatprep.subr.mxu0 %v1010
        %1054 = vmatpush1.msra.mxu0 %v1009
        %1055 = vmatprep.subr.mxu0 %v1013
        %1056 = vmatpush1.msra.mxu0 %v1012
        %1057 = vmatprep.subr.mxu0 %v1016
        %1058 = vmatpush1.msra.mxu0 %v1015
        %1059 = vmatprep.subr.mxu0 %v1019
        %1060 = vmatpush1.msra.mxu0 %v1018
        %1061 = vmatprep.subr.mxu0 %v1022
        %1062 = vmatpush1.msra.mxu0 %v1021
        %1063 = vmatprep.subr.mxu0 %v1025
        %1064 = vmatpush1.msra.mxu0 %v1024
        %1065 = vmatprep.subr.mxu0 %v1028
        %1066 = vmatpush1.msra.mxu0 %v1027
        %1067 = vmatprep.subr.mxu0 %v1031
        %1068 = vmatpush1.msra.mxu0 %v1030
        %1069 = vmatprep.subr.mxu0 %v1034
        %1070 = vmatpush1.msra.mxu0 %v1033
        %1071 = vmatprep.subr.mxu0 %v1037
        %1072 = vmatpush1.msra.mxu0 %v1036
        %1073 = vmatprep.subr.mxu0 %v1040
        %1074 = vmatpush1.msra.mxu0 %v1039
        %1075 = vmatprep.subr.mxu0 %v1043
        %1076 = vmatpush1.msra.mxu0 %v1042
        %1077 = vmatprep.subr.mxu0 0.0
        %1078 = vmatpush1.msra.mxu0 0.0
        %1079 = vmatprep.subr.mxu0 0.0
        %1080 = vmatpush1.msra.mxu0 0.0
        %1081 = vmatprep.subr.mxu0 0.0
        %1082 = vmatpush1.msra.mxu0 0.0
        %1083 = vmatprep.subr.mxu0 0.0
        %1084 = vmatpush1.msra.mxu0 0.0
        %1085 = vmatprep.subr.mxu0 0.0
        %1086 = vmatpush1.msra.mxu0 0.0
        %1087 = vmatprep.subr.mxu0 0.0
        %1088 = vmatpush1.msra.mxu0 0.0
        %1089 = vmatprep.subr.mxu0 0.0
        %1090 = vmatpush1.msra.mxu0 0.0
        %1091 = vmatprep.subr.mxu0 0.0
        %1092 = vmatpush1.msra.mxu0 0.0
        %1093 = vmatprep.subr.mxu0 0.0
        %1094 = vmatpush1.msra.mxu0 0.0
        %1095 = vmatprep.subr.mxu0 0.0
        %1096 = vmatpush1.msra.mxu0 0.0
        %1097 = vmatprep.subr.mxu0 0.0
        %1098 = vmatpush1.msra.mxu0 0.0
        %1099 = vmatprep.subr.mxu0 0.0
        %1100 = vmatpush1.msra.mxu0 0.0
        %1101 = vmatprep.subr.mxu0 0.0
        %1102 = vmatpush1.msra.mxu0 0.0
        %1103 = vmatprep.subr.mxu0 0.0
        %1104 = vmatpush1.msra.mxu0 0.0
        %1105 = vmatprep.subr.mxu0 0.0
        %1106 = vmatpush1.msra.mxu0 0.0
        %1107 = vmatprep.subr.mxu0 0.0
        %1108 = vmatpush1.msra.mxu0 0.0
        %1109 = vmatprep.mubr.f32.mxu0 0.0
        %1110 = vmatmul.mubr.f32.gmra.mrb[0].mxu0 %v989
        %v1111 = vpop.f32.mrb[0].mxu0
        %v1112 = vadd.f32 0.0, %v1111
        %v1113 = vpop.f32.mrb[0].mxu0
        %v1114 = vadd.f32 0.0, %v1113
        %1115 = vmatprep.mubr.f32.mxu0 0.0
        %1116 = vmatmul.mubr.f32.gmra.mrb[0].mxu0 %v990
        %v1117 = vpop.f32.mrb[0].mxu0
        %v1118 = vadd.f32 0.0, %v1117
        %v1119 = vpop.f32.mrb[0].mxu0
        %v1120 = vadd.f32 0.0, %v1119
        %1121 = vmatprep.mubr.f32.mxu0 0.0
        %1122 = vmatmul.mubr.f32.gmra.mrb[0].mxu0 %v991
        %v1123 = vpop.f32.mrb[0].mxu0
        %v1124 = vadd.f32 0.0, %v1123
        %v1125 = vpop.f32.mrb[0].mxu0
        %v1126 = vadd.f32 0.0, %v1125
        %1127 = vmatprep.mubr.f32.mxu0 0.0
        %1128 = vmatmul.mubr.f32.gmra.mrb[0].mxu0 %v992
        %v1129 = vpop.f32.mrb[0].mxu0
        %v1130 = vadd.f32 0.0, %v1129
        %v1131 = vpop.f32.mrb[0].mxu0
        %v1132 = vadd.f32 0.0, %v1131
        %1133 = vmatprep.mubr.f32.mxu0 0.0
        %1134 = vmatmul.mubr.f32.gmra.mrb[0].mxu0 %v993
        %v1135 = vpop.f32.mrb[0].mxu0
        %v1136 = vadd.f32 0.0, %v1135
        %v1137 = vpop.f32.mrb[0].mxu0
        %v1138 = vadd.f32 0.0, %v1137
        %1139 = vmatprep.mubr.f32.mxu0 0.0
        %1140 = vmatmul.mubr.f32.gmra.mrb[0].mxu0 %v994
        %v1141 = vpop.f32.mrb[0].mxu0
        %v1142 = vadd.f32 0.0, %v1141
        %v1143 = vpop.f32.mrb[0].mxu0
        %v1144 = vadd.f32 0.0, %v1143
        %1145 = vmatprep.mubr.f32.mxu0 0.0
        %1146 = vmatmul.mubr.f32.gmra.mrb[0].mxu0 %v995
        %v1147 = vpop.f32.mrb[0].mxu0
        %v1148 = vadd.f32 0.0, %v1147
        %v1149 = vpop.f32.mrb[0].mxu0
        %v1150 = vadd.f32 0.0, %v1149
        %1151 = vmatprep.mubr.f32.mxu0 0.0
        %1152 = vmatmul.mubr.f32.gmra.mrb[0].mxu0 %v996
        %v1153 = vpop.f32.mrb[0].mxu0
        %v1154 = vadd.f32 0.0, %v1153
        %v1155 = vpop.f32.mrb[0].mxu0
        %v1156 = vadd.f32 0.0, %v1155
        %1157 = vdwg.mxu0
        %1158 = vmatprep.subr.mxu0 0.0
        %1159 = vmatpush1.msra.mxu0 %v999
        %1160 = vmatprep.subr.mxu0 0.0
        %1161 = vmatpush1.msra.mxu0 %v1002
        %1162 = vmatprep.subr.mxu0 0.0
        %1163 = vmatpush1.msra.mxu0 %v1005
        %1164 = vmatprep.subr.mxu0 0.0
        %1165 = vmatpush1.msra.mxu0 %v1008
        %1166 = vmatprep.subr.mxu0 0.0
        %1167 = vmatpush1.msra.mxu0 %v1011
        %1168 = vmatprep.subr.mxu0 0.0
        %1169 = vmatpush1.msra.mxu0 %v1014
        %1170 = vmatprep.subr.mxu0 0.0
        %1171 = vmatpush1.msra.mxu0 %v1017
        %1172 = vmatprep.subr.mxu0 0.0
        %1173 = vmatpush1.msra.mxu0 %v1020
        %1174 = vmatprep.subr.mxu0 0.0
        %1175 = vmatpush1.msra.mxu0 %v1023
        %1176 = vmatprep.subr.mxu0 0.0
        %1177 = vmatpush1.msra.mxu0 %v1026
        %1178 = vmatprep.subr.mxu0 0.0
        %1179 = vmatpush1.msra.mxu0 %v1029
        %1180 = vmatprep.subr.mxu0 0.0
        %1181 = vmatpush1.msra.mxu0 %v1032
        %1182 = vmatprep.subr.mxu0 0.0
        %1183 = vmatpush1.msra.mxu0 %v1035
        %1184 = vmatprep.subr.mxu0 0.0
        %1185 = vmatpush1.msra.mxu0 %v1038
        %1186 = vmatprep.subr.mxu0 0.0
        %1187 = vmatpush1.msra.mxu0 %v1041
        %1188 = vmatprep.subr.mxu0 0.0
        %1189 = vmatpush1.msra.mxu0 %v1044
        %1190 = vmatprep.subr.mxu0 0.0
        %1191 = vmatpush1.msra.mxu0 0.0
        %1192 = vmatprep.subr.mxu0 0.0
        %1193 = vmatpush1.msra.mxu0 0.0
        %1194 = vmatprep.subr.mxu0 0.0
        %1195 = vmatpush1.msra.mxu0 0.0
        %1196 = vmatprep.subr.mxu0 0.0
        %1197 = vmatpush1.msra.mxu0 0.0
        %1198 = vmatprep.subr.mxu0 0.0
        %1199 = vmatpush1.msra.mxu0 0.0
        %1200 = vmatprep.subr.mxu0 0.0
        %1201 = vmatpush1.msra.mxu0 0.0
        %1202 = vmatprep.subr.mxu0 0.0
        %1203 = vmatpush1.msra.mxu0 0.0
        %1204 = vmatprep.subr.mxu0 0.0
        %1205 = vmatpush1.msra.mxu0 0.0
        %1206 = vmatprep.subr.mxu0 0.0
        %1207 = vmatpush1.msra.mxu0 0.0
        %1208 = vmatprep.subr.mxu0 0.0
        %1209 = vmatpush1.msra.mxu0 0.0
        %1210 = vmatprep.subr.mxu0 0.0
        %1211 = vmatpush1.msra.mxu0 0.0
        %1212 = vmatprep.subr.mxu0 0.0
        %1213 = vmatpush1.msra.mxu0 0.0
        %1214 = vmatprep.subr.mxu0 0.0
        %1215 = vmatpush1.msra.mxu0 0.0
        %1216 = vmatprep.subr.mxu0 0.0
        %1217 = vmatpush1.msra.mxu0 0.0
        %1218 = vmatprep.subr.mxu0 0.0
        %1219 = vmatpush1.msra.mxu0 0.0
        %1220 = vmatprep.subr.mxu0 0.0
        %1221 = vmatpush1.msra.mxu0 0.0
        %1222 = vmatprep.mubr.f32.mxu0 0.0
        %1223 = vmatmul.mubr.f32.gmra.mrb[0].mxu0 %v989
        %v1224 = vpop.f32.mrb[0].mxu0
        %v1225 = vadd.f32 0.0, %v1224
        %v1226 = vpop.f32.mrb[0].mxu0
        %1227 = vmatprep.mubr.f32.mxu0 0.0
        %1228 = vmatmul.mubr.f32.gmra.mrb[0].mxu0 %v990
        %v1229 = vpop.f32.mrb[0].mxu0
        %v1230 = vadd.f32 0.0, %v1229
        %v1231 = vpop.f32.mrb[0].mxu0
        %1232 = vmatprep.mubr.f32.mxu0 0.0
        %1233 = vmatmul.mubr.f32.gmra.mrb[0].mxu0 %v991
        %v1234 = vpop.f32.mrb[0].mxu0
        %v1235 = vadd.f32 0.0, %v1234
        %v1236 = vpop.f32.mrb[0].mxu0
        %1237 = vmatprep.mubr.f32.mxu0 0.0
        %1238 = vmatmul.mubr.f32.gmra.mrb[0].mxu0 %v992
        %v1239 = vpop.f32.mrb[0].mxu0
        %v1240 = vadd.f32 0.0, %v1239
        %v1241 = vpop.f32.mrb[0].mxu0
        %1242 = vmatprep.mubr.f32.mxu0 0.0
        %1243 = vmatmul.mubr.f32.gmra.mrb[0].mxu0 %v993
        %v1244 = vpop.f32.mrb[0].mxu0
        %v1245 = vadd.f32 0.0, %v1244
        %v1246 = vpop.f32.mrb[0].mxu0
        %1247 = vmatprep.mubr.f32.mxu0 0.0
        %1248 = vmatmul.mubr.f32.gmra.mrb[0].mxu0 %v994
        %v1249 = vpop.f32.mrb[0].mxu0
        %v1250 = vadd.f32 0.0, %v1249
        %v1251 = vpop.f32.mrb[0].mxu0
        %1252 = vmatprep.mubr.f32.mxu0 0.0
        %1253 = vmatmul.mubr.f32.gmra.mrb[0].mxu0 %v995
        %v1254 = vpop.f32.mrb[0].mxu0
        %v1255 = vadd.f32 0.0, %v1254
        %v1256 = vpop.f32.mrb[0].mxu0
        %1257 = vmatprep.mubr.f32.mxu0 0.0
        %1258 = vmatmul.mubr.f32.gmra.mrb[0].mxu0 %v996
        %v1259 = vpop.f32.mrb[0].mxu0
        %v1260 = vadd.f32 0.0, %v1259
        %v1261 = vpop.f32.mrb[0].mxu0
        %1262 = vdwg.mxu0
        %v1263 = vadd.f32 %v965, %v1112
        %v1264 = vadd.f32 %v968, %v1118
        %v1265 = vadd.f32 %v971, %v1124
        %v1266 = vadd.f32 %v974, %v1130
        %v1267 = vadd.f32 %v977, %v1136
        %v1268 = vadd.f32 %v980, %v1142
        %v1269 = vadd.f32 %v983, %v1148
        %v1270 = vadd.f32 %v986, %v1154
        %v1271 = vxor.u32 %v1263, 2147483648
        %v1272 = vxor.u32 %v1264, 2147483648
        %v1273 = vxor.u32 %v1265, 2147483648
        %v1274 = vxor.u32 %v1266, 2147483648
        %v1275 = vxor.u32 %v1267, 2147483648
        %v1276 = vxor.u32 %v1268, 2147483648
        %v1277 = vxor.u32 %v1269, 2147483648
        %v1278 = vxor.u32 %v1270, 2147483648
        %v1279 = vmul.f32 %v1271, 1.442695
        %v1280 = vpow.pop %v1279
        %v1281 = vmul.f32 %v1272, 1.442695
        %v1282 = vpow.pop %v1281
        %v1283 = vmul.f32 %v1273, 1.442695
        %v1284 = vpow.pop %v1283
        %v1285 = vmul.f32 %v1274, 1.442695
        %v1286 = vpow.pop %v1285
        %v1287 = vmul.f32 %v1275, 1.442695
        %v1288 = vpow.pop %v1287
        %v1289 = vmul.f32 %v1276, 1.442695
        %v1290 = vpow.pop %v1289
        %v1291 = vmul.f32 %v1277, 1.442695
        %v1292 = vpow.pop %v1291
        %v1293 = vmul.f32 %v1278, 1.442695
        %v1294 = vpow.pop %v1293
        %v1295 = vadd.f32 %v1280, 1.0
        %v1296 = vadd.f32 %v1282, 1.0
        %v1297 = vadd.f32 %v1284, 1.0
        %v1298 = vadd.f32 %v1286, 1.0
        %v1299 = vadd.f32 %v1288, 1.0
        %v1300 = vadd.f32 %v1290, 1.0
        %v1301 = vadd.f32 %v1292, 1.0
        %v1302 = vadd.f32 %v1294, 1.0
        %v1303 = vrcp.pop %v1295
        %v1304 = vmul.f32 1.0, %v1303
        %v1305 = vrcp.pop %v1296
        %v1306 = vmul.f32 1.0, %v1305
        %v1307 = vrcp.pop %v1297
        %v1308 = vmul.f32 1.0, %v1307
        %v1309 = vrcp.pop %v1298
        %v1310 = vmul.f32 1.0, %v1309
        %v1311 = vrcp.pop %v1299
        %v1312 = vmul.f32 1.0, %v1311
        %v1313 = vrcp.pop %v1300
        %v1314 = vmul.f32 1.0, %v1313
        %v1315 = vrcp.pop %v1301
        %v1316 = vmul.f32 1.0, %v1315
        %v1317 = vrcp.pop %v1302
        %v1318 = vmul.f32 1.0, %v1317
        %v1319 = vadd.f32 %v966, %v1114
        %v1320 = vadd.f32 %v969, %v1120
        %v1321 = vadd.f32 %v972, %v1126
        %v1322 = vadd.f32 %v975, %v1132
        %v1323 = vadd.f32 %v978, %v1138
        %v1324 = vadd.f32 %v981, %v1144
        %v1325 = vadd.f32 %v984, %v1150
        %v1326 = vadd.f32 %v987, %v1156
        %v1327 = vxor.u32 %v1319, 2147483648
        %v1328 = vxor.u32 %v1320, 2147483648
        %v1329 = vxor.u32 %v1321, 2147483648
        %v1330 = vxor.u32 %v1322, 2147483648
        %v1331 = vxor.u32 %v1323, 2147483648
        %v1332 = vxor.u32 %v1324, 2147483648
        %v1333 = vxor.u32 %v1325, 2147483648
        %v1334 = vxor.u32 %v1326, 2147483648
        %v1335 = vmul.f32 %v1327, 1.442695
        %v1336 = vpow.pop %v1335
        %v1337 = vmul.f32 %v1328, 1.442695
        %v1338 = vpow.pop %v1337
        %v1339 = vmul.f32 %v1329, 1.442695
        %v1340 = vpow.pop %v1339
        %v1341 = vmul.f32 %v1330, 1.442695
        %v1342 = vpow.pop %v1341
        %v1343 = vmul.f32 %v1331, 1.442695
        %v1344 = vpow.pop %v1343
        %v1345 = vmul.f32 %v1332, 1.442695
        %v1346 = vpow.pop %v1345
        %v1347 = vmul.f32 %v1333, 1.442695
        %v1348 = vpow.pop %v1347
        %v1349 = vmul.f32 %v1334, 1.442695
        %v1350 = vpow.pop %v1349
        %v1351 = vadd.f32 %v1336, 1.0
        %v1352 = vadd.f32 %v1338, 1.0
        %v1353 = vadd.f32 %v1340, 1.0
        %v1354 = vadd.f32 %v1342, 1.0
        %v1355 = vadd.f32 %v1344, 1.0
        %v1356 = vadd.f32 %v1346, 1.0
        %v1357 = vadd.f32 %v1348, 1.0
        %v1358 = vadd.f32 %v1350, 1.0
        %v1359 = vrcp.pop %v1351
        %v1360 = vmul.f32 1.0, %v1359
        %v1361 = vrcp.pop %v1352
        %v1362 = vmul.f32 1.0, %v1361
        %v1363 = vrcp.pop %v1353
        %v1364 = vmul.f32 1.0, %v1363
        %v1365 = vrcp.pop %v1354
        %v1366 = vmul.f32 1.0, %v1365
        %v1367 = vrcp.pop %v1355
        %v1368 = vmul.f32 1.0, %v1367
        %v1369 = vrcp.pop %v1356
        %v1370 = vmul.f32 1.0, %v1369
        %v1371 = vrcp.pop %v1357
        %v1372 = vmul.f32 1.0, %v1371
        %v1373 = vrcp.pop %v1358
        %v1374 = vmul.f32 1.0, %v1373
        %v1375 = vld [vmem:[%s6] sm:$0x1]
        %v1377 = vlaneseq
        %v1378 = vshrl.u32 %v1377, 7
        %v1379 = vsub.s32 0, %v1378
        %v1380 = vrot.slane %v1375, %v1379
        %v1382 = vadd.f32 %v1225, %v1380
        %v1383 = vadd.f32 %v1230, %v1380
        %v1384 = vadd.f32 %v1235, %v1380
        %v1385 = vadd.f32 %v1240, %v1380
        %v1386 = vadd.f32 %v1245, %v1380
        %v1387 = vadd.f32 %v1250, %v1380
        %v1388 = vadd.f32 %v1255, %v1380
        %v1389 = vadd.f32 %v1260, %v1380
        %v1390 = vmul.f32 %v1304, %v1382
        %v1391 = vmul.f32 %v1306, %v1383
        %v1392 = vmul.f32 %v1308, %v1384
        %v1393 = vmul.f32 %v1310, %v1385
        %v1394 = vmul.f32 %v1312, %v1386
        %v1395 = vmul.f32 %v1314, %v1387
        %v1396 = vmul.f32 %v1316, %v1388
        %v1397 = vmul.f32 %v1318, %v1389
        %v1398 = vadd.f32 %v967, %v1390
        %v1399 = vadd.f32 %v970, %v1391
        %v1400 = vadd.f32 %v973, %v1392
        %v1401 = vadd.f32 %v976, %v1393
        %v1402 = vadd.f32 %v979, %v1394
        %v1403 = vadd.f32 %v982, %v1395
        %v1404 = vadd.f32 %v985, %v1396
        %v1405 = vadd.f32 %v988, %v1397
        %v1406 = vtanh.pop %v1398
        %v1407 = vtanh.pop %v1399
        %v1408 = vtanh.pop %v1400
        %v1409 = vtanh.pop %v1401
        %v1410 = vtanh.pop %v1402
        %v1411 = vtanh.pop %v1403
        %v1412 = vtanh.pop %v1404
        %v1413 = vtanh.pop %v1405
        %v1414 = vsub.f32 1.0, %v1360
        %v1415 = vsub.f32 1.0, %v1362
        %v1416 = vsub.f32 1.0, %v1364
        %v1417 = vsub.f32 1.0, %v1366
        %v1418 = vsub.f32 1.0, %v1368
        %v1419 = vsub.f32 1.0, %v1370
        %v1420 = vsub.f32 1.0, %v1372
        %v1421 = vsub.f32 1.0, %v1374
        %v1422 = vmul.f32 %v1414, %v1406
        %v1423 = vmul.f32 %v1415, %v1407
        %v1424 = vmul.f32 %v1416, %v1408
        %v1425 = vmul.f32 %v1417, %v1409
        %v1426 = vmul.f32 %v1418, %v1410
        %v1427 = vmul.f32 %v1419, %v1411
        %v1428 = vmul.f32 %v1420, %v1412
        %v1429 = vmul.f32 %v1421, %v1413
        %v1430 = vmul.f32 %v1360, %v989
        %v1431 = vmul.f32 %v1362, %v990
        %v1432 = vmul.f32 %v1364, %v991
        %v1433 = vmul.f32 %v1366, %v992
        %v1434 = vmul.f32 %v1368, %v993
        %v1435 = vmul.f32 %v1370, %v994
        %v1436 = vmul.f32 %v1372, %v995
        %v1437 = vmul.f32 %v1374, %v996
        %v1438 = vadd.f32 %v1422, %v1430
        %v1439 = vadd.f32 %v1423, %v1431
        %v1440 = vadd.f32 %v1424, %v1432
        %v1441 = vadd.f32 %v1425, %v1433
        %v1442 = vadd.f32 %v1426, %v1434
        %v1443 = vadd.f32 %v1427, %v1435
        %v1444 = vadd.f32 %v1428, %v1436
        %v1445 = vadd.f32 %v1429, %v1437
        %v1446 = vlaneseq
        %v1447 = vand.u32 %v1446, 127
        %vm1448 = vcmp.lt.s32.totalorder %v1447, 32
        %1449 = vadd.xlane.f32.xlu0 %v1438
        %v1450 = vpop.xlane.xlu0 %1449
        %1451 = vadd.xlane.f32.xlu0 %v1439
        %v1452 = vpop.xlane.xlu0 %1451
        %1453 = vadd.xlane.f32.xlu0 %v1440
        %v1454 = vpop.xlane.xlu0 %1453
        %1455 = vadd.xlane.f32.xlu0 %v1441
        %v1456 = vpop.xlane.xlu0 %1455
        %1457 = vadd.xlane.f32.xlu0 %v1442
        %v1458 = vpop.xlane.xlu0 %1457
        %1459 = vadd.xlane.f32.xlu0 %v1443
        %v1460 = vpop.xlane.xlu0 %1459
        %1461 = vadd.xlane.f32.xlu0 %v1444
        %v1462 = vpop.xlane.xlu0 %1461
        %1463 = vadd.xlane.f32.xlu0 %v1445
        %v1464 = vpop.xlane.xlu0 %1463
        %v1465 = vmul.f32 %v1450, 0.03125
        %v1466 = vmul.f32 %v1452, 0.03125
        %v1467 = vmul.f32 %v1454, 0.03125
        %v1468 = vmul.f32 %v1456, 0.03125
        %v1469 = vmul.f32 %v1458, 0.03125
        %v1470 = vmul.f32 %v1460, 0.03125
        %v1471 = vmul.f32 %v1462, 0.03125
        %v1472 = vmul.f32 %v1464, 0.03125
        %v1473 = vsub.f32 %v1438, %v1465
        %v1474 = vsub.f32 %v1439, %v1466
        %v1475 = vsub.f32 %v1440, %v1467
        %v1476 = vsub.f32 %v1441, %v1468
        %v1477 = vsub.f32 %v1442, %v1469
        %v1478 = vsub.f32 %v1443, %v1470
        %v1479 = vsub.f32 %v1444, %v1471
        %v1480 = vsub.f32 %v1445, %v1472
        %v1481 = vsel %vm1448, 1, 0
        %vm1482 = vcmp.eq.s32.totalorder %v1481, 1
        %v1483 = vsel %vm1482, %v1473, 0.0
        %v1484 = vsel %vm1482, %v1474, 0.0
        %v1485 = vsel %vm1482, %v1475, 0.0
        %v1486 = vsel %vm1482, %v1476, 0.0
        %v1487 = vsel %vm1482, %v1477, 0.0
        %v1488 = vsel %vm1482, %v1478, 0.0
        %v1489 = vsel %vm1482, %v1479, 0.0
        %v1490 = vsel %vm1482, %v1480, 0.0
        %v1491 = vmul.f32 %v1483, %v1483
        %v1492 = vmul.f32 %v1484, %v1484
        %v1493 = vmul.f32 %v1485, %v1485
        %v1494 = vmul.f32 %v1486, %v1486
        %v1495 = vmul.f32 %v1487, %v1487
        %v1496 = vmul.f32 %v1488, %v1488
        %v1497 = vmul.f32 %v1489, %v1489
        %v1498 = vmul.f32 %v1490, %v1490
        %1499 = vadd.xlane.f32.xlu0 %v1491
        %v1500 = vpop.xlane.xlu0 %1499
        %1501 = vadd.xlane.f32.xlu0 %v1492
        %v1502 = vpop.xlane.xlu0 %1501
        %1503 = vadd.xlane.f32.xlu0 %v1493
        %v1504 = vpop.xlane.xlu0 %1503
        %1505 = vadd.xlane.f32.xlu0 %v1494
        %v1506 = vpop.xlane.xlu0 %1505
        %1507 = vadd.xlane.f32.xlu0 %v1495
        %v1508 = vpop.xlane.xlu0 %1507
        %1509 = vadd.xlane.f32.xlu0 %v1496
        %v1510 = vpop.xlane.xlu0 %1509
        %1511 = vadd.xlane.f32.xlu0 %v1497
        %v1512 = vpop.xlane.xlu0 %1511
        %1513 = vadd.xlane.f32.xlu0 %v1498
        %v1514 = vpop.xlane.xlu0 %1513
        %v1515 = vmul.f32 %v1500, 0.03125
        %v1516 = vmul.f32 %v1502, 0.03125
        %v1517 = vmul.f32 %v1504, 0.03125
        %v1518 = vmul.f32 %v1506, 0.03125
        %v1519 = vmul.f32 %v1508, 0.03125
        %v1520 = vmul.f32 %v1510, 0.03125
        %v1521 = vmul.f32 %v1512, 0.03125
        %v1522 = vmul.f32 %v1514, 0.03125
        %v1523 = vadd.f32 %v1515, 1e-05
        %v1524 = vadd.f32 %v1516, 1e-05
        %v1525 = vadd.f32 %v1517, 1e-05
        %v1526 = vadd.f32 %v1518, 1e-05
        %v1527 = vadd.f32 %v1519, 1e-05
        %v1528 = vadd.f32 %v1520, 1e-05
        %v1529 = vadd.f32 %v1521, 1e-05
        %v1530 = vadd.f32 %v1522, 1e-05
        %v1531 = vrsqrt.pop %v1523
        %v1532 = vrsqrt.pop %v1524
        %v1533 = vrsqrt.pop %v1525
        %v1534 = vrsqrt.pop %v1526
        %v1535 = vrsqrt.pop %v1527
        %v1536 = vrsqrt.pop %v1528
        %v1537 = vrsqrt.pop %v1529
        %v1538 = vrsqrt.pop %v1530
        %v1539 = vmul.f32 %v1483, %v1531
        %v1540 = vmul.f32 %v1484, %v1532
        %v1541 = vmul.f32 %v1485, %v1533
        %v1542 = vmul.f32 %v1486, %v1534
        %v1543 = vmul.f32 %v1487, %v1535
        %v1544 = vmul.f32 %v1488, %v1536
        %v1545 = vmul.f32 %v1489, %v1537
        %v1546 = vmul.f32 %v1490, %v1538
        %v1547 = vld [vmem:[%s7] sm:$0x1]
        %v1549 = vlaneseq
        %v1550 = vshrl.u32 %v1549, 7
        %v1551 = vsub.s32 0, %v1550
        %v1552 = vrot.slane %v1547, %v1551
        %v1554 = vmul.f32 %v1539, %v1552
        %v1555 = vmul.f32 %v1540, %v1552
        %v1556 = vmul.f32 %v1541, %v1552
        %v1557 = vmul.f32 %v1542, %v1552
        %v1558 = vmul.f32 %v1543, %v1552
        %v1559 = vmul.f32 %v1544, %v1552
        %v1560 = vmul.f32 %v1545, %v1552
        %v1561 = vmul.f32 %v1546, %v1552
        %v1562 = vld [vmem:[%s8] sm:$0x1]
        %v1564 = vlaneseq
        %v1565 = vshrl.u32 %v1564, 7
        %v1566 = vsub.s32 0, %v1565
        %v1567 = vrot.slane %v1562, %v1566
        %v1569 = vadd.f32 %v1554, %v1567
        %v1570 = vadd.f32 %v1555, %v1567
        %v1571 = vadd.f32 %v1556, %v1567
        %v1572 = vadd.f32 %v1557, %v1567
        %v1573 = vadd.f32 %v1558, %v1567
        %v1574 = vadd.f32 %v1559, %v1567
        %v1575 = vadd.f32 %v1560, %v1567
        %v1576 = vadd.f32 %v1561, %v1567
        %1577 = vst [vmem:[%s500] sm:$0xff] %v1569
        %1578 = vst [vmem:[%s500 + $0x8] sm:$0xff] %v1570
        %1579 = vst [vmem:[%s500 + $0x10] sm:$0xff] %v1571
        %1580 = vst [vmem:[%s500 + $0x18] sm:$0xff] %v1572
        %1581 = vst [vmem:[%s500 + $0x20] sm:$0xff] %v1573
        %1582 = vst [vmem:[%s500 + $0x28] sm:$0xff] %v1574
        %1583 = vst [vmem:[%s500 + $0x30] sm:$0xff] %v1575
        %1584 = vst [vmem:[%s500 + $0x38] sm:$0xff] %v1576
        %v1585 = vpack.c.bf16 %v1570, %v1569
        %v1586 = vpack.c.bf16 %v1572, %v1571
        %v1587 = vpack.c.bf16 %v1574, %v1573
        %v1588 = vpack.c.bf16 %v1576, %v1575
        %v1593 = vunpack.c.l.b16 %v1585
        %v1594 = vunpack.c.h.b16 %v1585
        %v1595 = vunpack.c.l.b16 %v1586
        %v1596 = vunpack.c.h.b16 %v1586
        %v1597 = vunpack.c.l.b16 %v1587
        %v1598 = vunpack.c.h.b16 %v1587
        %v1599 = vunpack.c.l.b16 %v1588
        %v1600 = vunpack.c.h.b16 %v1588
        %v1601 = vpack.c.b16 %v1593, %v1593
        %v1602 = vpack.c.b16 %v1594, %v1594
        %v1603 = vpack.c.b16 %v1595, %v1595
        %v1604 = vpack.c.b16 %v1596, %v1596
        %v1605 = vpack.c.b16 %v1597, %v1597
        %v1606 = vpack.c.b16 %v1598, %v1598
        %v1607 = vpack.c.b16 %v1599, %v1599
        %v1608 = vpack.c.b16 %v1600, %v1600
        %1617 = vst [vmem:[%s507] sm:$0xf] %v1601
        %1618 = vst [vmem:[%s507 + $0x4] sm:$0xf] %v1602
        %1619 = vst [vmem:[%s507 + $0x8] sm:$0xf] %v1603
        %1620 = vst [vmem:[%s507 + $0xc] sm:$0xf] %v1604
        %1621 = vst [vmem:[%s507 + $0x10] sm:$0xf] %v1605
        %1622 = vst [vmem:[%s507 + $0x14] sm:$0xf] %v1606
        %1623 = vst [vmem:[%s507 + $0x18] sm:$0xf] %v1607
        %1624 = vst [vmem:[%s507 + $0x1c] sm:$0xf] %v1608
        %s1625 = sand.u32 %s245, 1
        %s1626 = scalar_lea.sflag [#allocation4], %s1625
        %s1627 = sand.u32 %s245, 1
        %s1628 = smul.addr %s1627, 64
        %s1629 = scalar_lea.vmem [#allocation12], %s1628
        %s1630 = sand.u32 %s271, 1
        %s1631 = scalar_lea.sflag [#allocation14], %s1630
        %s1632 = sand.u32 %s271, 1
        %s1633 = smul.addr %s1632, 32
        %s1634 = scalar_lea.vmem [#allocation13], %s1633
        // Predicated region
        $region81: #{tpu_custom_call.1} parent=55 // pred_check
          %p1635 = pneg %p255
        $region82: #{tpu_custom_call.1} parent=55 // pred_check_branch
          %1637 = sbr.rel (%p1635) target = $region84
        $region83: #{tpu_custom_call.1} parent=55 // pred_region
          %s1638 = smul.u32 8, %s33
          %s1640 = ssub.s32 1024, 1024
          %1641 = vsyncadd %s1626, %s1640
          %s1642 = smul.addr %s1638, 128
          %s1643 = scalar_lea.hbm %s9, %s1642
          %s1644 = sshll.u32 %s1629, 4
          %s1645 = int_to_ptr.vmem [resolvable:$true] %s1644
          %1650 = dma.vmem_to_hbm [thread:$0]  %s1645, 1024, %s1643, %s1626, 128, 128, 8
        $region84: #{tpu_custom_call.1} parent=55 // pred_fallthru
          _
        // Predicated region
        $region85: #{tpu_custom_call.1} parent=55 // pred_check
          %p1651 = pneg %p281
        $region86: #{tpu_custom_call.1} parent=55 // pred_check_branch
          %1653 = sbr.rel (%p1651) target = $region88
        $region87: #{tpu_custom_call.1} parent=55 // pred_region
          %s1654 = smul.u32 8, %s33
          %s1656 = ssub.s32 512, 512
          %1657 = vsyncadd %s1631, %s1656
          %s1658 = smul.addr %s1654, 64
          %s1659 = scalar_lea.hbm %s10, %s1658
          %s1660 = sshll.u32 %s1634, 4
          %s1661 = int_to_ptr.vmem [resolvable:$true] %s1660
          %1666 = dma.vmem_to_hbm [thread:$0]  %s1661, 512, %s1659, %s1631, 64, 64, 4
        $region88: #{tpu_custom_call.1} parent=55 // pred_fallthru
          _
      $region56: #{tpu_custom_call.1} parent=5 // pred_fallthru
        _
      %p1667 = scmp.le.s32.totalorder 2, %s28
      // Predicated region
      $region89: #{tpu_custom_call.1} parent=5 // pred_check
        %p1668 = pneg %p1667
      $region90: #{tpu_custom_call.1} parent=5 // pred_check_branch
        %1670 = sbr.rel (%p1668) target = $region92
      $region91: #{tpu_custom_call.1} parent=5 // pred_region
        %s1671 = ssub.s32 %s28, 2
        // Predicated region
        $region93: #{tpu_custom_call.1} parent=91 // pred_check
          %p1672 = pneg %p261
        $region94: #{tpu_custom_call.1} parent=91 // pred_check_branch
          %1674 = sbr.rel (%p1672) target = $region96
        $region95: #{tpu_custom_call.1} parent=91 // pred_region
          %s1675 = sand.u32 %s246, 1
          %s1676 = scalar_lea.sflag [#allocation4], %s1675
          %s1677 = sand.u32 %s246, 1
          %s1678 = smul.addr %s1677, 64
          %s1679 = scalar_lea.vmem [#allocation12], %s1678
          %1680 = dma.done %s1676, 1024
        $region96: #{tpu_custom_call.1} parent=91 // pred_fallthru
          _
        // Predicated region
        $region97: #{tpu_custom_call.1} parent=91 // pred_check
          %p1681 = pneg %p287
        $region98: #{tpu_custom_call.1} parent=91 // pred_check_branch
          %1683 = sbr.rel (%p1681) target = $region100
        $region99: #{tpu_custom_call.1} parent=91 // pred_region
          %s1684 = sand.u32 %s272, 1
          %s1685 = scalar_lea.sflag [#allocation14], %s1684
          %s1686 = sand.u32 %s272, 1
          %s1687 = smul.addr %s1686, 32
          %s1688 = scalar_lea.vmem [#allocation13], %s1687
          %1689 = dma.done %s1685, 512
        $region100: #{tpu_custom_call.1} parent=91 // pred_fallthru
          _
      $region92: #{tpu_custom_call.1} parent=5 // pred_fallthru
        _
    $region6: #{tpu_custom_call.1} parent=1 // loop_footer
      %s32 = sadd.s32 1, %s28
    $region7: #{tpu_custom_call.1} parent=1 // loop_footer_branch
      %27 = sbr.rel target = $region3
    $region8: #{tpu_custom_call.1} parent=1 // loop_exit
      _
    %1690 = vsyncpa [#allocation3], 1
    %s1691 = scalar_lea.sflag [#allocation3], 1
    %1692 = vsyncpa %s1691, 1
    %1693 = vsyncpa [#allocation6], 1
    %1694 = vsyncpa [#allocation11], 1
    %1695 = vsyncpa [#allocation4], 1
    %s1696 = scalar_lea.sflag [#allocation4], 1
    %1697 = vsyncpa %s1696, 1
    %1698 = vsyncpa [#allocation14], 1
    %s1699 = scalar_lea.sflag [#allocation14], 1
    %1700 = vsyncpa %s1699, 1

</llo_original>
